<compile_context>
chip_gen: v6e
topology: v6e:2x2x1
jax: 0.10.0
libtpu: 0.0.40
codegen_flags: <defaults>
</compile_context>

<pallas_src>
import functools
import math

import jax
import jax.numpy as jnp
from jax import lax
from jax.experimental import pallas as pl
from jax.experimental.pallas import tpu as pltpu

EPS_LN = 1e-5
EPS_BN = 1e-5


# ----------------------------------------------------------------------------
# helpers
# ----------------------------------------------------------------------------
def _layernorm(x, gamma, beta):
    mu = jnp.mean(x, axis=-1, keepdims=True)
    var = jnp.mean(jnp.square(x - mu), axis=-1, keepdims=True)
    return (x - mu) * lax.rsqrt(var + EPS_LN) * gamma + beta


def _const_spec(a):
    zeros = (0,) * a.ndim
    return pl.BlockSpec(a.shape, lambda b, t, zeros=zeros: zeros)


def _pick_time_tile(T, pad, max_tile=256):
    """Largest tile <= max_tile that divides T, is a multiple of 8 and >= pad."""
    if T <= max_tile:
        return T
    for cand in range(max_tile, 7, -8):
        if T % cand == 0 and cand >= pad:
            return cand
    return T


# ----------------------------------------------------------------------------
# fused kernel:
#   LayerNorm -> pointwise conv (D->2D) -> GLU -> depthwise conv(K)
#   -> folded eval-mode BatchNorm -> SiLU -> pointwise conv (D->D)
# ----------------------------------------------------------------------------
def _conv_kernel(x_ref, xp_ref, xn_ref, lng, lnb, wa, ba, wb, bb, wdf, bnbias,
                 w2, b2, o_ref, xext_ref, *, ksize, pad, compute_dtype):
    tT = x_ref.shape[1]

    if pad > 0:
        # assemble the halo-extended input tile in VMEM scratch
        xext_ref[0:pad, :] = xp_ref[0, tT - pad:, :]
        xext_ref[pad:pad + tT, :] = x_ref[0]
        xext_ref[pad + tT:, :] = xn_ref[0, 0:pad, :]
        x_ext = xext_ref[...]                       # (tT + 2*pad, D)
    else:
        x_ext = x_ref[0]                            # (tT, D)

    # LayerNorm over channels (lane axis)
    xn = _layernorm(x_ext, lng[...], lnb[...])

    # pointwise conv D -> 2D + GLU over the channel halves (lane-axis matmuls)
    xc = xn.astype(compute_dtype)
    a = jnp.dot(xc, wa[...], preferred_element_type=jnp.float32) + ba[...]
    g = jnp.dot(xc, wb[...], preferred_element_type=jnp.float32) + bb[...]
    glu = a * jax.nn.sigmoid(g)                     # f32

    if pad > 0:
        # zero out halo rows that fall outside [0, T): Conv1d 'same' zero pad
        t_idx = pl.program_id(1)
        n_t = pl.num_programs(1)
        row = lax.broadcasted_iota(jnp.int32, glu.shape, 0)
        valid = jnp.logical_and(
            jnp.logical_or(row >= pad, t_idx > 0),
            jnp.logical_or(row < pad + tT, t_idx < n_t - 1))
        glu = jnp.where(valid, glu, 0.0)

    # depthwise conv over time: K statically shifted sublane slices (VPU only)
    acc = jnp.zeros((tT, glu.shape[1]), jnp.float32)
    for k in range(ksize):
        acc = acc + glu[k:k + tT, :] * wdf[k]       # wdf[k]: (1, D), BN-scaled

    # folded eval-mode BatchNorm bias + SiLU
    z = acc + bnbias[...]
    z = z * jax.nn.sigmoid(z)

    # pointwise conv D -> D (+bias); dropout: eval mode -> identity
    # TODO(synk): training-mode dropout / BatchNorm batch statistics not implemented.
    out = jnp.dot(z.astype(compute_dtype), w2[...],
                  preferred_element_type=jnp.float32) + b2[...]
    o_ref[0] = out.astype(o_ref.dtype)


def conformer_conv_module(x, p, kernel_size, *, tile_t=None,
                          compute_dtype=jnp.bfloat16):
    B, T, D = x.shape
    K = kernel_size
    assert (K - 1) % 2 == 0, "kernel_size must be odd for 'SAME' padding"
    pad = (K - 1) // 2
    if tile_t is None:
        tile_t = _pick_time_tile(T, pad)
    assert T % tile_t == 0, "time tile must divide T"
    assert tile_t == T or tile_t % 8 == 0, "time tile must be sublane aligned"
    assert tile_t >= pad, "time tile must cover the depthwise halo"
    n_t = T // tile_t

    # fold eval-mode BatchNorm into the depthwise weights + a single bias
    s = p["bn_g"] * lax.rsqrt(p["bn_v"] + EPS_BN)                 # (1, D)
    wd_fold = (p["wd"] * s[None]).astype(jnp.float32)             # (K, 1, D)
    bn_bias = (p["bn_b"] - p["bn_m"] * s).astype(jnp.float32)     # (1, D)

    # MXU operands in compute_dtype (bf16 on v6e/v7x); accumulation stays f32
    wa = p["wa"].astype(compute_dtype)
    wb = p["wb"].astype(compute_dtype)
    w2 = p["w2"].astype(compute_dtype)

    weights = (p["ln_g"], p["ln_b"], wa, p["ba"], wb, p["bb"],
               wd_fold, bn_bias, w2, p["b2"])

    x_spec = pl.BlockSpec((1, tile_t, D), lambda b, t: (b, t, 0))
    prev_spec = pl.BlockSpec((1, tile_t, D),
                             lambda b, t: (b, jnp.maximum(t - 1, 0), 0))
    next_spec = pl.BlockSpec((1, tile_t, D),
                             lambda b, t: (b, jnp.minimum(t + 1, n_t - 1), 0))

    cost = pl.CostEstimate(
        flops=int(2 * B * T * D * (3 * D) + 2 * B * T * K * D),
        transcendentals=int(2 * B * T * D),
        bytes_accessed=int(4 * (4 * B * T * D) + 4 * (3 * D * D + K * D)),
    )

    kernel = functools.partial(_conv_kernel, ksize=K, pad=pad,
                               compute_dtype=compute_dtype)
    return pl.pallas_call(
        kernel,
        out_shape=jax.ShapeDtypeStruct((B, T, D), x.dtype),
        grid=(B, n_t),
        in_specs=[x_spec, prev_spec, next_spec]
                 + [_const_spec(a) for a in weights],
        out_specs=pl.BlockSpec((1, tile_t, D), lambda b, t: (b, t, 0)),
        scratch_shapes=[pltpu.VMEM((tile_t + 2 * pad, D), jnp.float32)],
        compiler_params=pltpu.CompilerParams(
            dimension_semantics=("parallel", "parallel")),
        cost_estimate=cost,
    )(x, x, x, *weights)


# ----------------------------------------------------------------------------
# pure-JAX reference (eval mode) for correctness checking
# ----------------------------------------------------------------------------
def conformer_conv_ref(x, p, K):
    T = x.shape[1]
    pad = (K - 1) // 2
    mu = jnp.mean(x, axis=-1, keepdims=True)
    var = jnp.mean(jnp.square(x - mu), axis=-1, keepdims=True)
    xn = (x - mu) / jnp.sqrt(var + EPS_LN) * p["ln_g"] + p["ln_b"]
    a = xn @ p["wa"] + p["ba"]
    g = xn @ p["wb"] + p["bb"]
    glu = a * jax.nn.sigmoid(g)
    glu_pad = jnp.pad(glu, ((0, 0), (pad, pad), (0, 0)))
    y = sum(glu_pad[:, k:k + T, :] * p["wd"][k] for k in range(K))
    y = (y - p["bn_m"]) / jnp.sqrt(p["bn_v"] + EPS_BN) * p["bn_g"] + p["bn_b"]
    y = y * jax.nn.sigmoid(y)
    return y @ p["w2"] + p["b2"]


# ----------------------------------------------------------------------------
# synthetic, deterministic parameter init (PyTorch-like fan-in bounds)
# ----------------------------------------------------------------------------
def init_params(key, D, K):
    ks = jax.random.split(key, 8)

    def uni(k, shape, bound):
        return jax.random.uniform(k, shape, jnp.float32, -bound, bound)

    bD = 1.0 / math.sqrt(D)
    bK = 1.0 / math.sqrt(K)
    return dict(
        ln_g=jnp.ones((1, D), jnp.float32),
        ln_b=jnp.zeros((1, D), jnp.float32),
        # pointwise conv D -> 2D: first D output channels = GLU value half (wa),
        # second D output channels = GLU gate half (wb)
        wa=uni(ks[0], (D, D), bD), ba=uni(ks[1], (1, D), bD),
        wb=uni(ks[2], (D, D), bD), bb=uni(ks[3], (1, D), bD),
        # depthwise weight: torch (D, 1, K) stored as (K, 1, D)
        wd=uni(ks[4], (K, 1, D), bK),
        bn_g=jnp.ones((1, D), jnp.float32),
        bn_b=jnp.zeros((1, D), jnp.float32),
        bn_m=0.1 * jax.random.normal(ks[5], (1, D), jnp.float32),
        bn_v=1.0 + 0.1 * jax.random.uniform(ks[6], (1, D), jnp.float32),
        w2=uni(ks[7], (D, D), bD),
        b2=jnp.zeros((1, D), jnp.float32),
    )


if __name__ == "__main__":
    B, T, D, K = 2, 16, 32, 7       # NOTE: production D should be >=128 for lane-dense tiles
    key = jax.random.PRNGKey(0)
    kp, kx = jax.random.split(key)
    params = init_params(kp, D, K)
    x = jax.random.normal(kx, (B, T, D), jnp.float32)

    ref = conformer_conv_ref(x, params, K)

    # exact-math path (f32 MXU operands): strict check, exercises time tiling + halo
    f32_fwd = jax.jit(functools.partial(conformer_conv_module, kernel_size=K,
                                        tile_t=8, compute_dtype=jnp.float32))
    y32 = f32_fwd(x, params)
    jax.block_until_ready(y32)
    assert y32.shape == (B, T, D)
    assert bool(jnp.all(jnp.isfinite(y32)))
    err32 = float(jnp.max(jnp.abs(y32 - ref)))
    assert err32 < 2e-3, f"f32 kernel mismatch: {err32}"

    # perf path (bf16 MXU operands, f32 accumulation — v6e/v7x config): loose check
    bf16_fwd = jax.jit(functools.partial(conformer_conv_module, kernel_size=K,
                                         tile_t=8, compute_dtype=jnp.bfloat16))
    ybf = bf16_fwd(x, params)
    jax.block_until_ready(ybf)
    assert ybf.shape == (B, T, D)
    assert bool(jnp.all(jnp.isfinite(ybf)))
    errbf = float(jnp.max(jnp.abs(ybf - ref)))
    assert errbf < 1e-1, f"bf16 kernel mismatch: {errbf}"

    print("KERNEL_OK")
</pallas_src>

<mosaic_0001>
module attributes {stable_mosaic.version = 11 : i64} {
  func.func @_conv_kernel(%arg0: i32, %arg1: i32, %arg2: memref<1x8x32xf32, #tpu.memory_space<vmem>>, %arg3: memref<1x8x32xf32, #tpu.memory_space<vmem>>, %arg4: memref<1x8x32xf32, #tpu.memory_space<vmem>>, %arg5: memref<1x32xf32, #tpu.memory_space<vmem>>, %arg6: memref<1x32xf32, #tpu.memory_space<vmem>>, %arg7: memref<32x32xf32, #tpu.memory_space<vmem>>, %arg8: memref<1x32xf32, #tpu.memory_space<vmem>>, %arg9: memref<32x32xf32, #tpu.memory_space<vmem>>, %arg10: memref<1x32xf32, #tpu.memory_space<vmem>>, %arg11: memref<7x1x32xf32, #tpu.memory_space<vmem>>, %arg12: memref<1x32xf32, #tpu.memory_space<vmem>>, %arg13: memref<32x32xf32, #tpu.memory_space<vmem>>, %arg14: memref<1x32xf32, #tpu.memory_space<vmem>>, %arg15: memref<1x8x32xf32, #tpu.memory_space<vmem>>, %arg16: memref<14x32xf32, #tpu.memory_space<vmem>>) attributes {dimension_semantics = [#tpu.dimension_semantics<parallel>, #tpu.dimension_semantics<parallel>], iteration_bounds = array<i64: 2, 2>, scalar_prefetch = 0 : i64, scratch_operands = 1 : i64, tpu.core_type = #tpu.core_type<tc>, window_params = [{transform_indices = @transform_0, window_bounds = array<i64: 1, 8, 32>}, {transform_indices = @transform_1, window_bounds = array<i64: 1, 8, 32>}, {transform_indices = @transform_2, window_bounds = array<i64: 1, 8, 32>}, {pipeline_mode = #tpu.pipeline_mode<synchronous>, transform_indices = @transform_3, window_bounds = array<i64: 1, 32>}, {pipeline_mode = #tpu.pipeline_mode<synchronous>, transform_indices = @transform_4, window_bounds = array<i64: 1, 32>}, {pipeline_mode = #tpu.pipeline_mode<synchronous>, transform_indices = @transform_5, window_bounds = array<i64: 32, 32>}, {pipeline_mode = #tpu.pipeline_mode<synchronous>, transform_indices = @transform_6, window_bounds = array<i64: 1, 32>}, {pipeline_mode = #tpu.pipeline_mode<synchronous>, transform_indices = @transform_7, window_bounds = array<i64: 32, 32>}, {pipeline_mode = #tpu.pipeline_mode<synchronous>, transform_indices = @transform_8, window_bounds = array<i64: 1, 32>}, {pipeline_mode = #tpu.pipeline_mode<synchronous>, transform_indices = @transform_9, window_bounds = array<i64: 7, 1, 32>}, {pipeline_mode = #tpu.pipeline_mode<synchronous>, transform_indices = @transform_10, window_bounds = array<i64: 1, 32>}, {pipeline_mode = #tpu.pipeline_mode<synchronous>, transform_indices = @transform_11, window_bounds = array<i64: 32, 32>}, {pipeline_mode = #tpu.pipeline_mode<synchronous>, transform_indices = @transform_12, window_bounds = array<i64: 1, 32>}, {transform_indices = @transform_13, window_bounds = array<i64: 1, 8, 32>}]} {
    %c0 = arith.constant 0 : index
    %c5 = arith.constant 5 : index
    %c0_0 = arith.constant 0 : index
    %0 = vector.load %arg3[%c0, %c5, %c0_0] : memref<1x8x32xf32, #tpu.memory_space<vmem>>, vector<1x3x32xf32>
    %1 = vector.shape_cast %0 : vector<1x3x32xf32> to vector<3x32xf32>
    %c0_1 = arith.constant 0 : index
    %c0_2 = arith.constant 0 : index
    %2 = vector.load %arg16[%c0_1, %c0_2] : memref<14x32xf32, #tpu.memory_space<vmem>>, vector<3x32xf32>
    tpu.vector_store %arg16[%c0_1, %c0_2], %1 {strides = array<i32>} : memref<14x32xf32, #tpu.memory_space<vmem>>, vector<3x32xf32>,
    %c0_3 = arith.constant 0 : index
    %c0_4 = arith.constant 0 : index
    %c0_5 = arith.constant 0 : index
    %3 = vector.load %arg2[%c0_3, %c0_4, %c0_5] : memref<1x8x32xf32, #tpu.memory_space<vmem>>, vector<1x8x32xf32>
    %4 = vector.shape_cast %3 : vector<1x8x32xf32> to vector<8x32xf32>
    %c3 = arith.constant 3 : index
    %c0_6 = arith.constant 0 : index
    %5 = vector.load %arg16[%c3, %c0_6] : memref<14x32xf32, #tpu.memory_space<vmem>>, vector<8x32xf32>
    tpu.vector_store %arg16[%c3, %c0_6], %4 {strides = array<i32>} : memref<14x32xf32, #tpu.memory_space<vmem>>, vector<8x32xf32>,
    %c0_7 = arith.constant 0 : index
    %c0_8 = arith.constant 0 : index
    %c0_9 = arith.constant 0 : index
    %6 = vector.load %arg4[%c0_7, %c0_8, %c0_9] : memref<1x8x32xf32, #tpu.memory_space<vmem>>, vector<1x3x32xf32>
    %7 = vector.shape_cast %6 : vector<1x3x32xf32> to vector<3x32xf32>
    %c11 = arith.constant 11 : index
    %c0_10 = arith.constant 0 : index
    %8 = vector.load %arg16[%c11, %c0_10] : memref<14x32xf32, #tpu.memory_space<vmem>>, vector<3x32xf32>
    tpu.vector_store %arg16[%c11, %c0_10], %7 {strides = array<i32>} : memref<14x32xf32, #tpu.memory_space<vmem>>, vector<3x32xf32>,
    %c0_11 = arith.constant 0 : index
    %c0_12 = arith.constant 0 : index
    %9 = vector.load %arg16[%c0_11, %c0_12] : memref<14x32xf32, #tpu.memory_space<vmem>>, vector<14x32xf32>
    %c0_13 = arith.constant 0 : index
    %c0_14 = arith.constant 0 : index
    %10 = vector.load %arg5[%c0_13, %c0_14] : memref<1x32xf32, #tpu.memory_space<vmem>>, vector<1x32xf32>
    %c0_15 = arith.constant 0 : index
    %c0_16 = arith.constant 0 : index
    %11 = vector.load %arg6[%c0_15, %c0_16] : memref<1x32xf32, #tpu.memory_space<vmem>>, vector<1x32xf32>
    %cst = arith.constant dense<0.000000e+00> : vector<14xf32>
    %12 = vector.multi_reduction <add>, %9, %cst [1] : vector<14x32xf32> to vector<14xf32>
    %13 = vector.shape_cast %12 : vector<14xf32> to vector<14x1xf32>
    %cst_17 = arith.constant 3.200000e+01 : f32
    %14 = vector.broadcast %cst_17 : f32 to vector<14x1xf32>
    %15 = arith.divf %13, %14 : vector<14x1xf32>
    %16 = vector.broadcast %15 : vector<14x1xf32> to vector<14x32xf32>
    %17 = arith.subf %9, %16 : vector<14x32xf32>
    %18 = arith.mulf %17, %17 : vector<14x32xf32>
    %cst_18 = arith.constant dense<0.000000e+00> : vector<14xf32>
    %19 = vector.multi_reduction <add>, %18, %cst_18 [1] : vector<14x32xf32> to vector<14xf32>
    %20 = vector.shape_cast %19 : vector<14xf32> to vector<14x1xf32>
    %cst_19 = arith.constant 3.200000e+01 : f32
    %21 = vector.broadcast %cst_19 : f32 to vector<14x1xf32>
    %22 = arith.divf %20, %21 : vector<14x1xf32>
    %23 = vector.broadcast %15 : vector<14x1xf32> to vector<14x32xf32>
    %24 = arith.subf %9, %23 : vector<14x32xf32>
    %cst_20 = arith.constant 9.99999974E-6 : f32
    %25 = vector.broadcast %cst_20 : f32 to vector<14x1xf32>
    %26 = arith.addf %22, %25 : vector<14x1xf32>
    %27 = math.rsqrt %26 : vector<14x1xf32>
    %28 = vector.broadcast %27 : vector<14x1xf32> to vector<14x32xf32>
    %29 = arith.mulf %24, %28 : vector<14x32xf32>
    %30 = vector.broadcast %10 : vector<1x32xf32> to vector<14x32xf32>
    %31 = arith.mulf %29, %30 : vector<14x32xf32>
    %32 = vector.broadcast %11 : vector<1x32xf32> to vector<14x32xf32>
    %33 = arith.addf %31, %32 : vector<14x32xf32>
    %c0_21 = arith.constant 0 : index
    %c0_22 = arith.constant 0 : index
    %34 = vector.load %arg7[%c0_21, %c0_22] : memref<32x32xf32, #tpu.memory_space<vmem>>, vector<32x32xf32>
    %cst_23 = arith.constant dense<0.000000e+00> : vector<14x32xf32>
    %35 = tpu.matmul %33, %34, %cst_23 {dimension_numbers = #tpu.dot_dimension_numbers<[1], [0], [0], [1], [0, 0, 1, 1], [], []>} : vector<14x32xf32>, vector<32x32xf32>, vector<14x32xf32> -> vector<14x32xf32>
    %c0_24 = arith.constant 0 : index
    %c0_25 = arith.constant 0 : index
    %36 = vector.load %arg8[%c0_24, %c0_25] : memref<1x32xf32, #tpu.memory_space<vmem>>, vector<1x32xf32>
    %37 = vector.broadcast %36 : vector<1x32xf32> to vector<14x32xf32>
    %38 = arith.addf %35, %37 : vector<14x32xf32>
    %c0_26 = arith.constant 0 : index
    %c0_27 = arith.constant 0 : index
    %39 = vector.load %arg9[%c0_26, %c0_27] : memref<32x32xf32, #tpu.memory_space<vmem>>, vector<32x32xf32>
    %cst_28 = arith.constant dense<0.000000e+00> : vector<14x32xf32>
    %40 = tpu.matmul %33, %39, %cst_28 {dimension_numbers = #tpu.dot_dimension_numbers<[1], [0], [0], [1], [0, 0, 1, 1], [], []>} : vector<14x32xf32>, vector<32x32xf32>, vector<14x32xf32> -> vector<14x32xf32>
    %c0_29 = arith.constant 0 : index
    %c0_30 = arith.constant 0 : index
    %41 = vector.load %arg10[%c0_29, %c0_30] : memref<1x32xf32, #tpu.memory_space<vmem>>, vector<1x32xf32>
    %42 = vector.broadcast %41 : vector<1x32xf32> to vector<14x32xf32>
    %43 = arith.addf %40, %42 : vector<14x32xf32>
    %44 = arith.negf %43 : vector<14x32xf32>
    %45 = math.exp %44 : vector<14x32xf32>
    %cst_31 = arith.constant 1.000000e+00 : f32
    %46 = vector.broadcast %cst_31 : f32 to vector<14x32xf32>
    %47 = arith.addf %46, %45 : vector<14x32xf32>
    %48 = arith.divf %46, %47 : vector<14x32xf32>
    %49 = arith.mulf %38, %48 : vector<14x32xf32>
    %50 = tpu.iota {dimensions = array<i32: 0>} : vector<14x32xi32>
    %c3_i32 = arith.constant 3 : i32
    %51 = vector.broadcast %c3_i32 : i32 to vector<14x32xi32>
    %52 = arith.cmpi sge, %50, %51 : vector<14x32xi32>
    %c0_i32 = arith.constant 0 : i32
    %53 = arith.cmpi sgt, %arg1, %c0_i32 : i32
    %54 = vector.broadcast %53 : i1 to vector<14x32xi1>
    %55 = arith.ori %52, %54 : vector<14x32xi1>
    %c11_i32 = arith.constant 11 : i32
    %56 = vector.broadcast %c11_i32 : i32 to vector<14x32xi32>
    %57 = arith.cmpi slt, %50, %56 : vector<14x32xi32>
    %c1_i32 = arith.constant 1 : i32
    %58 = arith.cmpi slt, %arg1, %c1_i32 : i32
    %59 = vector.broadcast %58 : i1 to vector<14x32xi1>
    %60 = arith.ori %57, %59 : vector<14x32xi1>
    %61 = arith.andi %55, %60 : vector<14x32xi1>
    %cst_32 = arith.constant 0.000000e+00 : f32
    %62 = vector.broadcast %cst_32 : f32 to vector<14x32xf32>
    %63 = arith.select %61, %49, %62 : vector<14x32xi1>, vector<14x32xf32>
    %cst_33 = arith.constant 0.000000e+00 : f32
    %64 = vector.broadcast %cst_33 : f32 to vector<8x32xf32>
    %65 = vector.extract_strided_slice %63 {offsets = [0, 0], sizes = [8, 32], strides = [1, 1]} : vector<14x32xf32> to vector<8x32xf32>
    %c0_34 = arith.constant 0 : index
    %c0_35 = arith.constant 0 : index
    %c0_36 = arith.constant 0 : index
    %66 = vector.load %arg11[%c0_34, %c0_35, %c0_36] : memref<7x1x32xf32, #tpu.memory_space<vmem>>, vector<1x1x32xf32>
    %67 = vector.shape_cast %66 : vector<1x1x32xf32> to vector<1x32xf32>
    %68 = vector.broadcast %67 : vector<1x32xf32> to vector<8x32xf32>
    %69 = arith.mulf %65, %68 : vector<8x32xf32>
    %70 = arith.addf %64, %69 : vector<8x32xf32>
    %71 = vector.extract_strided_slice %63 {offsets = [1, 0], sizes = [8, 32], strides = [1, 1]} : vector<14x32xf32> to vector<8x32xf32>
    %c1 = arith.constant 1 : index
    %c0_37 = arith.constant 0 : index
    %c0_38 = arith.constant 0 : index
    %72 = vector.load %arg11[%c1, %c0_37, %c0_38] : memref<7x1x32xf32, #tpu.memory_space<vmem>>, vector<1x1x32xf32>
    %73 = vector.shape_cast %72 : vector<1x1x32xf32> to vector<1x32xf32>
    %74 = vector.broadcast %73 : vector<1x32xf32> to vector<8x32xf32>
    %75 = arith.mulf %71, %74 : vector<8x32xf32>
    %76 = arith.addf %70, %75 : vector<8x32xf32>
    %77 = vector.extract_strided_slice %63 {offsets = [2, 0], sizes = [8, 32], strides = [1, 1]} : vector<14x32xf32> to vector<8x32xf32>
    %c2 = arith.constant 2 : index
    %c0_39 = arith.constant 0 : index
    %c0_40 = arith.constant 0 : index
    %78 = vector.load %arg11[%c2, %c0_39, %c0_40] : memref<7x1x32xf32, #tpu.memory_space<vmem>>, vector<1x1x32xf32>
    %79 = vector.shape_cast %78 : vector<1x1x32xf32> to vector<1x32xf32>
    %80 = vector.broadcast %79 : vector<1x32xf32> to vector<8x32xf32>
    %81 = arith.mulf %77, %80 : vector<8x32xf32>
    %82 = arith.addf %76, %81 : vector<8x32xf32>
    %83 = vector.extract_strided_slice %63 {offsets = [3, 0], sizes = [8, 32], strides = [1, 1]} : vector<14x32xf32> to vector<8x32xf32>
    %c3_41 = arith.constant 3 : index
    %c0_42 = arith.constant 0 : index
    %c0_43 = arith.constant 0 : index
    %84 = vector.load %arg11[%c3_41, %c0_42, %c0_43] : memref<7x1x32xf32, #tpu.memory_space<vmem>>, vector<1x1x32xf32>
    %85 = vector.shape_cast %84 : vector<1x1x32xf32> to vector<1x32xf32>
    %86 = vector.broadcast %85 : vector<1x32xf32> to vector<8x32xf32>
    %87 = arith.mulf %83, %86 : vector<8x32xf32>
    %88 = arith.addf %82, %87 : vector<8x32xf32>
    %89 = vector.extract_strided_slice %63 {offsets = [4, 0], sizes = [8, 32], strides = [1, 1]} : vector<14x32xf32> to vector<8x32xf32>
    %c4 = arith.constant 4 : index
    %c0_44 = arith.constant 0 : index
    %c0_45 = arith.constant 0 : index
    %90 = vector.load %arg11[%c4, %c0_44, %c0_45] : memref<7x1x32xf32, #tpu.memory_space<vmem>>, vector<1x1x32xf32>
    %91 = vector.shape_cast %90 : vector<1x1x32xf32> to vector<1x32xf32>
    %92 = vector.broadcast %91 : vector<1x32xf32> to vector<8x32xf32>
    %93 = arith.mulf %89, %92 : vector<8x32xf32>
    %94 = arith.addf %88, %93 : vector<8x32xf32>
    %95 = vector.extract_strided_slice %63 {offsets = [5, 0], sizes = [8, 32], strides = [1, 1]} : vector<14x32xf32> to vector<8x32xf32>
    %c5_46 = arith.constant 5 : index
    %c0_47 = arith.constant 0 : index
    %c0_48 = arith.constant 0 : index
    %96 = vector.load %arg11[%c5_46, %c0_47, %c0_48] : memref<7x1x32xf32, #tpu.memory_space<vmem>>, vector<1x1x32xf32>
    %97 = vector.shape_cast %96 : vector<1x1x32xf32> to vector<1x32xf32>
    %98 = vector.broadcast %97 : vector<1x32xf32> to vector<8x32xf32>
    %99 = arith.mulf %95, %98 : vector<8x32xf32>
    %100 = arith.addf %94, %99 : vector<8x32xf32>
    %101 = vector.extract_strided_slice %63 {offsets = [6, 0], sizes = [8, 32], strides = [1, 1]} : vector<14x32xf32> to vector<8x32xf32>
    %c6 = arith.constant 6 : index
    %c0_49 = arith.constant 0 : index
    %c0_50 = arith.constant 0 : index
    %102 = vector.load %arg11[%c6, %c0_49, %c0_50] : memref<7x1x32xf32, #tpu.memory_space<vmem>>, vector<1x1x32xf32>
    %103 = vector.shape_cast %102 : vector<1x1x32xf32> to vector<1x32xf32>
    %104 = vector.broadcast %103 : vector<1x32xf32> to vector<8x32xf32>
    %105 = arith.mulf %101, %104 : vector<8x32xf32>
    %106 = arith.addf %100, %105 : vector<8x32xf32>
    %c0_51 = arith.constant 0 : index
    %c0_52 = arith.constant 0 : index
    %107 = vector.load %arg12[%c0_51, %c0_52] : memref<1x32xf32, #tpu.memory_space<vmem>>, vector<1x32xf32>
    %108 = vector.broadcast %107 : vector<1x32xf32> to vector<8x32xf32>
    %109 = arith.addf %106, %108 : vector<8x32xf32>
    %110 = arith.negf %109 : vector<8x32xf32>
    %111 = math.exp %110 : vector<8x32xf32>
    %cst_53 = arith.constant 1.000000e+00 : f32
    %112 = vector.broadcast %cst_53 : f32 to vector<8x32xf32>
    %113 = arith.addf %112, %111 : vector<8x32xf32>
    %114 = arith.divf %112, %113 : vector<8x32xf32>
    %115 = arith.mulf %109, %114 : vector<8x32xf32>
    %c0_54 = arith.constant 0 : index
    %c0_55 = arith.constant 0 : index
    %116 = vector.load %arg13[%c0_54, %c0_55] : memref<32x32xf32, #tpu.memory_space<vmem>>, vector<32x32xf32>
    %cst_56 = arith.constant dense<0.000000e+00> : vector<8x32xf32>
    %117 = tpu.matmul %115, %116, %cst_56 {dimension_numbers = #tpu.dot_dimension_numbers<[1], [0], [0], [1], [0, 0, 1, 1], [], []>} : vector<8x32xf32>, vector<32x32xf32>, vector<8x32xf32> -> vector<8x32xf32>
    %c0_57 = arith.constant 0 : index
    %c0_58 = arith.constant 0 : index
    %118 = vector.load %arg14[%c0_57, %c0_58] : memref<1x32xf32, #tpu.memory_space<vmem>>, vector<1x32xf32>
    %119 = vector.broadcast %118 : vector<1x32xf32> to vector<8x32xf32>
    %120 = arith.addf %117, %119 : vector<8x32xf32>
    %c0_59 = arith.constant 0 : index
    %c0_60 = arith.constant 0 : index
    %c0_61 = arith.constant 0 : index
    %121 = vector.load %arg15[%c0_59, %c0_60, %c0_61] : memref<1x8x32xf32, #tpu.memory_space<vmem>>, vector<1x8x32xf32>
    %122 = vector.shape_cast %121 : vector<1x8x32xf32> to vector<8x32xf32>
    %123 = vector.shape_cast %120 : vector<8x32xf32> to vector<1x8x32xf32>
    tpu.vector_store %arg15[%c0_59, %c0_60, %c0_61], %123 {strides = array<i32>} : memref<1x8x32xf32, #tpu.memory_space<vmem>>, vector<1x8x32xf32>,
    return
  }
  func.func @transform_0(%arg0: i32, %arg1: i32) -> (i32, i32, i32) {
    %c0_i32 = arith.constant 0 : i32
    %c0_i32_0 = arith.constant 0 : i32
    return %arg0, %arg1, %c0_i32 : i32, i32, i32
  }
  func.func @transform_1(%arg0: i32, %arg1: i32) -> (i32, i32, i32) {
    %c1_i32 = arith.constant 1 : i32
    %0 = arith.subi %arg1, %c1_i32 : i32
    %c0_i32 = arith.constant 0 : i32
    %1 = arith.maxsi %0, %c0_i32 : i32
    %c0_i32_0 = arith.constant 0 : i32
    %c0_i32_1 = arith.constant 0 : i32
    return %arg0, %1, %c0_i32_0 : i32, i32, i32
  }
  func.func @transform_2(%arg0: i32, %arg1: i32) -> (i32, i32, i32) {
    %c1_i32 = arith.constant 1 : i32
    %0 = arith.addi %arg1, %c1_i32 : i32
    %c1_i32_0 = arith.constant 1 : i32
    %1 = arith.minsi %0, %c1_i32_0 : i32
    %c0_i32 = arith.constant 0 : i32
    %c0_i32_1 = arith.constant 0 : i32
    return %arg0, %1, %c0_i32 : i32, i32, i32
  }
  func.func @transform_3(%arg0: i32, %arg1: i32) -> (i32, i32) {
    %c0_i32 = arith.constant 0 : i32
    %c0_i32_0 = arith.constant 0 : i32
    %c0_i32_1 = arith.constant 0 : i32
    return %c0_i32, %c0_i32_0 : i32, i32
  }
  func.func @transform_4(%arg0: i32, %arg1: i32) -> (i32, i32) {
    %c0_i32 = arith.constant 0 : i32
    %c0_i32_0 = arith.constant 0 : i32
    %c0_i32_1 = arith.constant 0 : i32
    return %c0_i32, %c0_i32_0 : i32, i32
  }
  func.func @transform_5(%arg0: i32, %arg1: i32) -> (i32, i32) {
    %c0_i32 = arith.constant 0 : i32
    %c0_i32_0 = arith.constant 0 : i32
    %c0_i32_1 = arith.constant 0 : i32
    return %c0_i32, %c0_i32_0 : i32, i32
  }
  func.func @transform_6(%arg0: i32, %arg1: i32) -> (i32, i32) {
    %c0_i32 = arith.constant 0 : i32
    %c0_i32_0 = arith.constant 0 : i32
    %c0_i32_1 = arith.constant 0 : i32
    return %c0_i32, %c0_i32_0 : i32, i32
  }
  func.func @transform_7(%arg0: i32, %arg1: i32) -> (i32, i32) {
    %c0_i32 = arith.constant 0 : i32
    %c0_i32_0 = arith.constant 0 : i32
    %c0_i32_1 = arith.constant 0 : i32
    return %c0_i32, %c0_i32_0 : i32, i32
  }
  func.func @transform_8(%arg0: i32, %arg1: i32) -> (i32, i32) {
    %c0_i32 = arith.constant 0 : i32
    %c0_i32_0 = arith.constant 0 : i32
    %c0_i32_1 = arith.constant 0 : i32
    return %c0_i32, %c0_i32_0 : i32, i32
  }
  func.func @transform_9(%arg0: i32, %arg1: i32) -> (i32, i32, i32) {
    %c0_i32 = arith.constant 0 : i32
    %c0_i32_0 = arith.constant 0 : i32
    %c0_i32_1 = arith.constant 0 : i32
    %c0_i32_2 = arith.constant 0 : i32
    return %c0_i32, %c0_i32_0, %c0_i32_1 : i32, i32, i32
  }
  func.func @transform_10(%arg0: i32, %arg1: i32) -> (i32, i32) {
    %c0_i32 = arith.constant 0 : i32
    %c0_i32_0 = arith.constant 0 : i32
    %c0_i32_1 = arith.constant 0 : i32
    return %c0_i32, %c0_i32_0 : i32, i32
  }
  func.func @transform_11(%arg0: i32, %arg1: i32) -> (i32, i32) {
    %c0_i32 = arith.constant 0 : i32
    %c0_i32_0 = arith.constant 0 : i32
    %c0_i32_1 = arith.constant 0 : i32
    return %c0_i32, %c0_i32_0 : i32, i32
  }
  func.func @transform_12(%arg0: i32, %arg1: i32) -> (i32, i32) {
    %c0_i32 = arith.constant 0 : i32
    %c0_i32_0 = arith.constant 0 : i32
    %c0_i32_1 = arith.constant 0 : i32
    return %c0_i32, %c0_i32_0 : i32, i32
  }
  func.func @transform_13(%arg0: i32, %arg1: i32) -> (i32, i32, i32) {
    %c0_i32 = arith.constant 0 : i32
    %c0_i32_0 = arith.constant 0 : i32
    return %arg0, %arg1, %c0_i32 : i32, i32, i32
  }
}

</mosaic_0001>

<llo_original>
// kernel: conformer_conv_module.1
$region0: #{conformer_conv_module.1}
  #allocation0 [shape = 'u32[]', space=smem, size = 0x4, offset = 0x4, fixed_abs, tag = 'smem constant byte address 0x4 - core index']
  #allocation1 [shape = 'u32[144,128]{1,0:T(1,128)}', space=vmem, size = 0x12000, scoped, tag = 'internal scratch']
  #allocation2 [shape = 'f32[14,32]{1,0:T(8,128)}', space=vmem, size = 0x2000, scoped, tag = 'scratch operand']
  %s0 = inlined_call_operand.hbm [shape: f32[2,16,32], index: 0, kind: input, shape index: {}, may-alias: {0,1,2}]
  %s1 = inlined_call_operand.hbm [shape: f32[2,16,32], index: 1, kind: input, shape index: {}, may-alias: {0,1,2}]
  %s2 = inlined_call_operand.hbm [shape: f32[2,16,32], index: 2, kind: input, shape index: {}, may-alias: {0,1,2}]
  %s3 = inlined_call_operand.vmem [shape: f32[1,32], index: 3, kind: input, shape index: {}]
  %s4 = inlined_call_operand.vmem [shape: f32[1,32], index: 4, kind: input, shape index: {}]
  %s5 = inlined_call_operand.vmem [shape: f32[32,32], index: 5, kind: input, shape index: {}]
  %s6 = inlined_call_operand.vmem [shape: f32[1,32], index: 6, kind: input, shape index: {}]
  %s7 = inlined_call_operand.hbm [shape: f32[32,32], index: 7, kind: input, shape index: {}]
  %s8 = inlined_call_operand.vmem [shape: f32[1,32], index: 8, kind: input, shape index: {}]
  %s9 = inlined_call_operand.vmem [shape: f32[7,1,32], index: 9, kind: input, shape index: {}]
  %s10 = inlined_call_operand.vmem [shape: f32[1,32], index: 10, kind: input, shape index: {}]
  %s11 = inlined_call_operand.hbm [shape: f32[32,32], index: 11, kind: input, shape index: {}]
  %s12 = inlined_call_operand.vmem [shape: f32[1,32], index: 12, kind: input, shape index: {}]
  %s13 = inlined_call_operand.hbm [shape: f32[2,16,32], index: 13, kind: output, shape index: {}]
  %s14 = sld [smem:[#allocation0]]
  $region105: #{conformer_conv_module.1} parent=0
    _
  %s16 = ssub.s32 1, %s14
  %s17 = scalar_select 0, %s16, %s14
  $region1: #{conformer_conv_module.1} parent=0
    #allocation3 [shape = 'u8[8192]{0}', space=vmem, size = 0x2000, scoped, tag = 'input window, operand 0']
    #allocation4 [shape = 's32[2]{0}', space=sflag, size = 0x8, scoped, tag = 'scoped memory for conformer_conv_module.1']
    #allocation5 [shape = 's32[2]{0}', space=sflag, size = 0x8, scoped, tag = 'scoped memory for conformer_conv_module.1']
    #allocation6 [shape = 'u8[8192]{0}', space=vmem, size = 0x2000, scoped, tag = 'input window, operand 1']
    #allocation7 [shape = 's32[2]{0}', space=sflag, size = 0x8, scoped, tag = 'scoped memory for conformer_conv_module.1']
    #allocation8 [shape = 'u8[8192]{0}', space=vmem, size = 0x2000, scoped, tag = 'input window, operand 2']
    #allocation9 [shape = 'u8[16384]{0}', space=vmem, size = 0x4000, scoped, tag = 'input window, operand 7, single buffered']
    #allocation10 [shape = 's32[1]{0}', space=sflag, size = 0x4, scoped, tag = 'scoped memory for conformer_conv_module.1']
    #allocation11 [shape = 'u8[16384]{0}', space=vmem, size = 0x4000, scoped, tag = 'input window, operand 11, single buffered']
    #allocation12 [shape = 'u8[8192]{0}', space=vmem, size = 0x2000, scoped, tag = 'output window, operand 0']
    %18 = vsyncpa [#allocation4], 0
    %s19 = scalar_lea.sflag [#allocation4], 1
    %20 = vsyncpa %s19, 0
    %21 = vsyncpa [#allocation7], 0
    %s22 = scalar_lea.sflag [#allocation7], 1
    %23 = vsyncpa %s22, 0
    %24 = vsyncpa [#allocation10], 0
    %25 = vsyncpa [#allocation5], 0
    %s26 = scalar_lea.sflag [#allocation5], 1
    %27 = vsyncpa %s26, 0
    loop: start=0, step=1, limit=6
    $region2: #{conformer_conv_module.1} parent=1 // loop_pre_header
      _
    $region3: #{conformer_conv_module.1} parent=1 // loop_header
      %s29 = sphi 0, %s33
      %p30 = scmp.ge.s32.totalorder %s29, 6
      %s36 = sphi 0, %s48
      %s37 = sphi 0, %s44
      %s38 = sphi 0, %s36
      %s39 = sphi 0, %s37
      %s40 = sphi 0, %s38
      %s41 = sphi 0, %s39
      %s53 = sphi 0, %s55
      %s56 = sphi 0, %s53
      %s57 = sphi 0, %s56
      %s73 = sphi 0, %s57
      %s87 = sphi 0, %s89
      %s90 = sphi 0, %s87
      %s91 = sphi 0, %s90
      %s107 = sphi 0, %s91
      %s121 = sphi 0, %s123
      %s124 = sphi 0, %s121
      %s125 = sphi 0, %s124
      %s141 = sphi 0, %s125
      %s145 = sphi 0, %s145
      %s147 = sphi 0, %s145
      %s148 = sphi 0, %s147
      %s162 = sphi 0, %s148
      %s166 = sphi 0, %s166
      %s168 = sphi 0, %s166
      %s169 = sphi 0, %s168
      %s183 = sphi 0, %s169
      %s187 = sphi 0, %s187
      %s189 = sphi 0, %s187
      %s190 = sphi 0, %s189
      %s204 = sphi 0, %s190
      %s208 = sphi 0, %s208
      %s210 = sphi 0, %s208
      %s211 = sphi 0, %s210
      %s225 = sphi 0, %s211
      %s229 = sphi 0, %s229
      %s231 = sphi 0, %s229
      %s232 = sphi 0, %s231
      %s246 = sphi 0, %s232
      %s250 = sphi 0, %s250
      %s252 = sphi 0, %s250
      %s253 = sphi 0, %s252
      %s267 = sphi 0, %s253
      %s271 = sphi 0, %s271
      %s273 = sphi 0, %s271
      %s274 = sphi 0, %s273
      %s288 = sphi 0, %s274
      %s292 = sphi 0, %s292
      %s294 = sphi 0, %s292
      %s295 = sphi 0, %s294
      %s309 = sphi 0, %s295
      %s313 = sphi 0, %s313
      %s315 = sphi 0, %s313
      %s316 = sphi 0, %s315
      %s330 = sphi 0, %s316
      %s334 = sphi 0, %s334
      %s336 = sphi 0, %s334
      %s337 = sphi 0, %s336
      %s351 = sphi 0, %s337
      %s359 = sphi 0, %s361
      %s362 = sphi 0, %s359
      %s363 = sphi 0, %s362
      %s379 = sphi 0, %s363
    $region4: #{conformer_conv_module.1} parent=1 // loop_header_branch
      %32 = sbr.rel (%p30) target = $region8
    $region5: #{conformer_conv_module.1} parent=1 // loop_body
      %s34 = ssub.s32 %s29, 1
      %s35 = ssub.s32 %s29, 2
      %s42 = sadd.s32 1, %s37
      %p43 = scmp.ge.s32.totalorder %s42, 2
      %s44 = scalar_select %p43, 0, %s42
      %s45 = sadd.s32 1, %s36
      %s46 = scalar_select %p43, %s45, %s36
      %p47 = scmp.ge.s32.totalorder %s46, 2
      %s48 = scalar_select %p47, 0, %s46
      %s49 = ssub.s32 %s36, %s48
      %s50 = ssub.s32 %s37, %s44
      %s51 = sor.u32 %s49, %s50
      %p52 = scmp.eq.s32.totalorder %s51, 0
      %s54 = sadd.s32 %s53, 1
      %s55 = scalar_select %p52, %s53, %s54
      %p58 = pneg %p52
      %p59 = scmp.eq.s32.totalorder %s29, 3
      %p60 = por %p58, %p59
      %p61 = scmp.ne.s32.totalorder %s53, %s56
      %p62 = scmp.eq.s32.totalorder %s29, 0
      %p63 = por %p61, %p62
      %p64 = scmp.ne.s32.totalorder %s53, %s56
      %p65 = scmp.eq.s32.totalorder %s34, 3
      %p66 = por %p64, %p65
      %p67 = scmp.ne.s32.totalorder %s56, %s57
      %p68 = scmp.eq.s32.totalorder %s34, 0
      %p69 = por %p67, %p68
      %p70 = scmp.ne.s32.totalorder %s56, %s57
      %p71 = scmp.eq.s32.totalorder %s35, 3
      %p72 = por %p70, %p71
      %p74 = scmp.ne.s32.totalorder %s57, %s73
      %p75 = scmp.eq.s32.totalorder %s35, 0
      %p76 = por %p74, %p75
      %s77 = ssub.s32 %s37, 1
      %p78 = scmp.gt.s32.totalorder %s77, 0
      %s79 = scalar_select %p78, %s77, 0
      %s80 = ssub.s32 %s44, 1
      %p81 = scmp.gt.s32.totalorder %s80, 0
      %s82 = scalar_select %p81, %s80, 0
      %s83 = ssub.s32 %s36, %s48
      %s84 = ssub.s32 %s79, %s82
      %s85 = sor.u32 %s83, %s84
      %p86 = scmp.eq.s32.totalorder %s85, 0
      %s88 = sadd.s32 %s87, 1
      %s89 = scalar_select %p86, %s87, %s88
      %p92 = pneg %p86
      %p93 = scmp.eq.s32.totalorder %s29, 3
      %p94 = por %p92, %p93
      %p95 = scmp.ne.s32.totalorder %s87, %s90
      %p96 = scmp.eq.s32.totalorder %s29, 0
      %p97 = por %p95, %p96
      %p98 = scmp.ne.s32.totalorder %s87, %s90
      %p99 = scmp.eq.s32.totalorder %s34, 3
      %p100 = por %p98, %p99
      %p101 = scmp.ne.s32.totalorder %s90, %s91
      %p102 = scmp.eq.s32.totalorder %s34, 0
      %p103 = por %p101, %p102
      %p104 = scmp.ne.s32.totalorder %s90, %s91
      %p105 = scmp.eq.s32.totalorder %s35, 3
      %p106 = por %p104, %p105
      %p108 = scmp.ne.s32.totalorder %s91, %s107
      %p109 = scmp.eq.s32.totalorder %s35, 0
      %p110 = por %p108, %p109
      %s111 = sadd.s32 %s37, 1
      %p112 = scmp.lt.s32.totalorder %s111, 1
      %s113 = scalar_select %p112, %s111, 1
      %s114 = sadd.s32 %s44, 1
      %p115 = scmp.lt.s32.totalorder %s114, 1
      %s116 = scalar_select %p115, %s114, 1
      %s117 = ssub.s32 %s36, %s48
      %s118 = ssub.s32 %s113, %s116
      %s119 = sor.u32 %s117, %s118
      %p120 = scmp.eq.s32.totalorder %s119, 0
      %s122 = sadd.s32 %s121, 1
      %s123 = scalar_select %p120, %s121, %s122
      %p126 = pneg %p120
      %p127 = scmp.eq.s32.totalorder %s29, 3
      %p128 = por %p126, %p127
      %p129 = scmp.ne.s32.totalorder %s121, %s124
      %p130 = scmp.eq.s32.totalorder %s29, 0
      %p131 = por %p129, %p130
      %p132 = scmp.ne.s32.totalorder %s121, %s124
      %p133 = scmp.eq.s32.totalorder %s34, 3
      %p134 = por %p132, %p133
      %p135 = scmp.ne.s32.totalorder %s124, %s125
      %p136 = scmp.eq.s32.totalorder %s34, 0
      %p137 = por %p135, %p136
      %p138 = scmp.ne.s32.totalorder %s124, %s125
      %p139 = scmp.eq.s32.totalorder %s35, 3
      %p140 = por %p138, %p139
      %p142 = scmp.ne.s32.totalorder %s125, %s141
      %p143 = scmp.eq.s32.totalorder %s35, 0
      %p144 = por %p142, %p143
      %s146 = sadd.s32 %s145, 1
      %p149 = scmp.eq.s32.totalorder %s29, 3
      %p150 = scmp.ne.s32.totalorder %s145, %s147
      %p151 = scmp.eq.s32.totalorder %s29, 0
      %p152 = por %p150, %p151
      %p153 = scmp.ne.s32.totalorder %s145, %s147
      %p154 = scmp.eq.s32.totalorder %s34, 3
      %p155 = por %p153, %p154
      %p156 = scmp.ne.s32.totalorder %s147, %s148
      %p157 = scmp.eq.s32.totalorder %s34, 0
      %p158 = por %p156, %p157
      %p159 = scmp.ne.s32.totalorder %s147, %s148
      %p160 = scmp.eq.s32.totalorder %s35, 3
      %p161 = por %p159, %p160
      %p163 = scmp.ne.s32.totalorder %s148, %s162
      %p164 = scmp.eq.s32.totalorder %s35, 0
      %p165 = por %p163, %p164
      %s167 = sadd.s32 %s166, 1
      %p170 = scmp.eq.s32.totalorder %s29, 3
      %p171 = scmp.ne.s32.totalorder %s166, %s168
      %p172 = scmp.eq.s32.totalorder %s29, 0
      %p173 = por %p171, %p172
      %p174 = scmp.ne.s32.totalorder %s166, %s168
      %p175 = scmp.eq.s32.totalorder %s34, 3
      %p176 = por %p174, %p175
      %p177 = scmp.ne.s32.totalorder %s168, %s169
      %p178 = scmp.eq.s32.totalorder %s34, 0
      %p179 = por %p177, %p178
      %p180 = scmp.ne.s32.totalorder %s168, %s169
      %p181 = scmp.eq.s32.totalorder %s35, 3
      %p182 = por %p180, %p181
      %p184 = scmp.ne.s32.totalorder %s169, %s183
      %p185 = scmp.eq.s32.totalorder %s35, 0
      %p186 = por %p184, %p185
      %s188 = sadd.s32 %s187, 1
      %p191 = scmp.eq.s32.totalorder %s29, 3
      %p192 = scmp.ne.s32.totalorder %s187, %s189
      %p193 = scmp.eq.s32.totalorder %s29, 0
      %p194 = por %p192, %p193
      %p195 = scmp.ne.s32.totalorder %s187, %s189
      %p196 = scmp.eq.s32.totalorder %s34, 3
      %p197 = por %p195, %p196
      %p198 = scmp.ne.s32.totalorder %s189, %s190
      %p199 = scmp.eq.s32.totalorder %s34, 0
      %p200 = por %p198, %p199
      %p201 = scmp.ne.s32.totalorder %s189, %s190
      %p202 = scmp.eq.s32.totalorder %s35, 3
      %p203 = por %p201, %p202
      %p205 = scmp.ne.s32.totalorder %s190, %s204
      %p206 = scmp.eq.s32.totalorder %s35, 0
      %p207 = por %p205, %p206
      %s209 = sadd.s32 %s208, 1
      %p212 = scmp.eq.s32.totalorder %s29, 3
      %p213 = scmp.ne.s32.totalorder %s208, %s210
      %p214 = scmp.eq.s32.totalorder %s29, 0
      %p215 = por %p213, %p214
      %p216 = scmp.ne.s32.totalorder %s208, %s210
      %p217 = scmp.eq.s32.totalorder %s34, 3
      %p218 = por %p216, %p217
      %p219 = scmp.ne.s32.totalorder %s210, %s211
      %p220 = scmp.eq.s32.totalorder %s34, 0
      %p221 = por %p219, %p220
      %p222 = scmp.ne.s32.totalorder %s210, %s211
      %p223 = scmp.eq.s32.totalorder %s35, 3
      %p224 = por %p222, %p223
      %p226 = scmp.ne.s32.totalorder %s211, %s225
      %p227 = scmp.eq.s32.totalorder %s35, 0
      %p228 = por %p226, %p227
      %s230 = sadd.s32 %s229, 1
      %p233 = scmp.eq.s32.totalorder %s29, 3
      %p234 = scmp.ne.s32.totalorder %s229, %s231
      %p235 = scmp.eq.s32.totalorder %s29, 0
      %p236 = por %p234, %p235
      %p237 = scmp.ne.s32.totalorder %s229, %s231
      %p238 = scmp.eq.s32.totalorder %s34, 3
      %p239 = por %p237, %p238
      %p240 = scmp.ne.s32.totalorder %s231, %s232
      %p241 = scmp.eq.s32.totalorder %s34, 0
      %p242 = por %p240, %p241
      %p243 = scmp.ne.s32.totalorder %s231, %s232
      %p244 = scmp.eq.s32.totalorder %s35, 3
      %p245 = por %p243, %p244
      %p247 = scmp.ne.s32.totalorder %s232, %s246
      %p248 = scmp.eq.s32.totalorder %s35, 0
      %p249 = por %p247, %p248
      %s251 = sadd.s32 %s250, 1
      %p254 = scmp.eq.s32.totalorder %s29, 3
      %p255 = scmp.ne.s32.totalorder %s250, %s252
      %p256 = scmp.eq.s32.totalorder %s29, 0
      %p257 = por %p255, %p256
      %p258 = scmp.ne.s32.totalorder %s250, %s252
      %p259 = scmp.eq.s32.totalorder %s34, 3
      %p260 = por %p258, %p259
      %p261 = scmp.ne.s32.totalorder %s252, %s253
      %p262 = scmp.eq.s32.totalorder %s34, 0
      %p263 = por %p261, %p262
      %p264 = scmp.ne.s32.totalorder %s252, %s253
      %p265 = scmp.eq.s32.totalorder %s35, 3
      %p266 = por %p264, %p265
      %p268 = scmp.ne.s32.totalorder %s253, %s267
      %p269 = scmp.eq.s32.totalorder %s35, 0
      %p270 = por %p268, %p269
      %s272 = sadd.s32 %s271, 1
      %p275 = scmp.eq.s32.totalorder %s29, 3
      %p276 = scmp.ne.s32.totalorder %s271, %s273
      %p277 = scmp.eq.s32.totalorder %s29, 0
      %p278 = por %p276, %p277
      %p279 = scmp.ne.s32.totalorder %s271, %s273
      %p280 = scmp.eq.s32.totalorder %s34, 3
      %p281 = por %p279, %p280
      %p282 = scmp.ne.s32.totalorder %s273, %s274
      %p283 = scmp.eq.s32.totalorder %s34, 0
      %p284 = por %p282, %p283
      %p285 = scmp.ne.s32.totalorder %s273, %s274
      %p286 = scmp.eq.s32.totalorder %s35, 3
      %p287 = por %p285, %p286
      %p289 = scmp.ne.s32.totalorder %s274, %s288
      %p290 = scmp.eq.s32.totalorder %s35, 0
      %p291 = por %p289, %p290
      %s293 = sadd.s32 %s292, 1
      %p296 = scmp.eq.s32.totalorder %s29, 3
      %p297 = scmp.ne.s32.totalorder %s292, %s294
      %p298 = scmp.eq.s32.totalorder %s29, 0
      %p299 = por %p297, %p298
      %p300 = scmp.ne.s32.totalorder %s292, %s294
      %p301 = scmp.eq.s32.totalorder %s34, 3
      %p302 = por %p300, %p301
      %p303 = scmp.ne.s32.totalorder %s294, %s295
      %p304 = scmp.eq.s32.totalorder %s34, 0
      %p305 = por %p303, %p304
      %p306 = scmp.ne.s32.totalorder %s294, %s295
      %p307 = scmp.eq.s32.totalorder %s35, 3
      %p308 = por %p306, %p307
      %p310 = scmp.ne.s32.totalorder %s295, %s309
      %p311 = scmp.eq.s32.totalorder %s35, 0
      %p312 = por %p310, %p311
      %s314 = sadd.s32 %s313, 1
      %p317 = scmp.eq.s32.totalorder %s29, 3
      %p318 = scmp.ne.s32.totalorder %s313, %s315
      %p319 = scmp.eq.s32.totalorder %s29, 0
      %p320 = por %p318, %p319
      %p321 = scmp.ne.s32.totalorder %s313, %s315
      %p322 = scmp.eq.s32.totalorder %s34, 3
      %p323 = por %p321, %p322
      %p324 = scmp.ne.s32.totalorder %s315, %s316
      %p325 = scmp.eq.s32.totalorder %s34, 0
      %p326 = por %p324, %p325
      %p327 = scmp.ne.s32.totalorder %s315, %s316
      %p328 = scmp.eq.s32.totalorder %s35, 3
      %p329 = por %p327, %p328
      %p331 = scmp.ne.s32.totalorder %s316, %s330
      %p332 = scmp.eq.s32.totalorder %s35, 0
      %p333 = por %p331, %p332
      %s335 = sadd.s32 %s334, 1
      %p338 = scmp.eq.s32.totalorder %s29, 3
      %p339 = scmp.ne.s32.totalorder %s334, %s336
      %p340 = scmp.eq.s32.totalorder %s29, 0
      %p341 = por %p339, %p340
      %p342 = scmp.ne.s32.totalorder %s334, %s336
      %p343 = scmp.eq.s32.totalorder %s34, 3
      %p344 = por %p342, %p343
      %p345 = scmp.ne.s32.totalorder %s336, %s337
      %p346 = scmp.eq.s32.totalorder %s34, 0
      %p347 = por %p345, %p346
      %p348 = scmp.ne.s32.totalorder %s336, %s337
      %p349 = scmp.eq.s32.totalorder %s35, 3
      %p350 = por %p348, %p349
      %p352 = scmp.ne.s32.totalorder %s337, %s351
      %p353 = scmp.eq.s32.totalorder %s35, 0
      %p354 = por %p352, %p353
      %s355 = ssub.s32 %s36, %s48
      %s356 = ssub.s32 %s37, %s44
      %s357 = sor.u32 %s355, %s356
      %p358 = scmp.eq.s32.totalorder %s357, 0
      %s360 = sadd.s32 %s359, 1
      %s361 = scalar_select %p358, %s359, %s360
      %p364 = pneg %p358
      %p365 = scmp.eq.s32.totalorder %s29, 3
      %p366 = por %p364, %p365
      %p367 = scmp.ne.s32.totalorder %s359, %s362
      %p368 = scmp.eq.s32.totalorder %s29, 0
      %p369 = por %p367, %p368
      %p370 = scmp.ne.s32.totalorder %s359, %s362
      %p371 = scmp.eq.s32.totalorder %s34, 3
      %p372 = por %p370, %p371
      %p373 = scmp.ne.s32.totalorder %s362, %s363
      %p374 = scmp.eq.s32.totalorder %s34, 0
      %p375 = por %p373, %p374
      %p376 = scmp.ne.s32.totalorder %s362, %s363
      %p377 = scmp.eq.s32.totalorder %s35, 3
      %p378 = por %p376, %p377
      %p380 = scmp.ne.s32.totalorder %s363, %s379
      %p381 = scmp.eq.s32.totalorder %s35, 0
      %p382 = por %p380, %p381
      %p383 = scmp.le.s32.totalorder 1, %s29
      %p384 = scmp.lt.s32.totalorder %s29, 5
      %p385 = pnand %p383, %p384
      %p386 = pneg %p385
      // Predicated region
      $region9: #{conformer_conv_module.1} parent=5 // pred_check
        _
      $region10: #{conformer_conv_module.1} parent=5 // pred_check_branch
        %388 = sbr.rel (%p385) target = $region12
      $region11: #{conformer_conv_module.1} parent=5 // pred_region
        %s389 = ssub.s32 %s29, 1
        // Predicated region
        $region13: #{conformer_conv_module.1} parent=11 // pred_check
          %p390 = pneg %p158
        $region14: #{conformer_conv_module.1} parent=11 // pred_check_branch
          %392 = sbr.rel (%p390) target = $region16
        $region15: #{conformer_conv_module.1} parent=11 // pred_region
          _
        $region16: #{conformer_conv_module.1} parent=11 // pred_fallthru
          _
        // Predicated region
        $region17: #{conformer_conv_module.1} parent=11 // pred_check
          %p393 = pneg %p179
        $region18: #{conformer_conv_module.1} parent=11 // pred_check_branch
          %395 = sbr.rel (%p393) target = $region20
        $region19: #{conformer_conv_module.1} parent=11 // pred_region
          _
        $region20: #{conformer_conv_module.1} parent=11 // pred_fallthru
          _
        // Predicated region
        $region21: #{conformer_conv_module.1} parent=11 // pred_check
          %p396 = pneg %p200
        $region22: #{conformer_conv_module.1} parent=11 // pred_check_branch
          %398 = sbr.rel (%p396) target = $region24
        $region23: #{conformer_conv_module.1} parent=11 // pred_region
          _
        $region24: #{conformer_conv_module.1} parent=11 // pred_fallthru
          _
        // Predicated region
        $region25: #{conformer_conv_module.1} parent=11 // pred_check
          %p399 = pneg %p221
        $region26: #{conformer_conv_module.1} parent=11 // pred_check_branch
          %401 = sbr.rel (%p399) target = $region28
        $region27: #{conformer_conv_module.1} parent=11 // pred_region
          _
        $region28: #{conformer_conv_module.1} parent=11 // pred_fallthru
          _
        // Predicated region
        $region29: #{conformer_conv_module.1} parent=11 // pred_check
          %p402 = pneg %p242
        $region30: #{conformer_conv_module.1} parent=11 // pred_check_branch
          %404 = sbr.rel (%p402) target = $region32
        $region31: #{conformer_conv_module.1} parent=11 // pred_region
          %s406 = ssub.s32 512, 512
          %407 = vsyncadd [#allocation10], %s406
          %s408 = sshll.u32 [#allocation9], 4
          %s409 = int_to_ptr.vmem [resolvable:$true] %s408
          %414 = dma.hbm_to_vmem [thread:$0]  %s7, 512, %s409, [#allocation10], 128, 128, 8
        $region32: #{conformer_conv_module.1} parent=11 // pred_fallthru
          _
        // Predicated region
        $region33: #{conformer_conv_module.1} parent=11 // pred_check
          %p415 = pneg %p263
        $region34: #{conformer_conv_module.1} parent=11 // pred_check_branch
          %417 = sbr.rel (%p415) target = $region36
        $region35: #{conformer_conv_module.1} parent=11 // pred_region
          _
        $region36: #{conformer_conv_module.1} parent=11 // pred_fallthru
          _
        // Predicated region
        $region37: #{conformer_conv_module.1} parent=11 // pred_check
          %p418 = pneg %p284
        $region38: #{conformer_conv_module.1} parent=11 // pred_check_branch
          %420 = sbr.rel (%p418) target = $region40
        $region39: #{conformer_conv_module.1} parent=11 // pred_region
          _
        $region40: #{conformer_conv_module.1} parent=11 // pred_fallthru
          _
        // Predicated region
        $region41: #{conformer_conv_module.1} parent=11 // pred_check
          %p421 = pneg %p305
        $region42: #{conformer_conv_module.1} parent=11 // pred_check_branch
          %423 = sbr.rel (%p421) target = $region44
        $region43: #{conformer_conv_module.1} parent=11 // pred_region
          _
        $region44: #{conformer_conv_module.1} parent=11 // pred_fallthru
          _
        // Predicated region
        $region45: #{conformer_conv_module.1} parent=11 // pred_check
          %p424 = pneg %p326
        $region46: #{conformer_conv_module.1} parent=11 // pred_check_branch
          %426 = sbr.rel (%p424) target = $region48
        $region47: #{conformer_conv_module.1} parent=11 // pred_region
          %s428 = ssub.s32 512, 512
          %429 = vsyncadd [#allocation10], %s428
          %s430 = sshll.u32 [#allocation11], 4
          %s431 = int_to_ptr.vmem [resolvable:$true] %s430
          %436 = dma.hbm_to_vmem [thread:$0]  %s11, 512, %s431, [#allocation10], 128, 128, 8
        $region48: #{conformer_conv_module.1} parent=11 // pred_fallthru
          _
        // Predicated region
        $region49: #{conformer_conv_module.1} parent=11 // pred_check
          %p437 = pneg %p347
        $region50: #{conformer_conv_module.1} parent=11 // pred_check_branch
          %439 = sbr.rel (%p437) target = $region52
        $region51: #{conformer_conv_module.1} parent=11 // pred_region
          _
        $region52: #{conformer_conv_module.1} parent=11 // pred_fallthru
          _
      $region12: #{conformer_conv_module.1} parent=5 // pred_fallthru
        _
      %p440 = scmp.lt.s32.totalorder %s29, 4
      // Predicated region
      $region53: #{conformer_conv_module.1} parent=5 // pred_check
        %p441 = pneg %p440
      $region54: #{conformer_conv_module.1} parent=5 // pred_check_branch
        %443 = sbr.rel (%p441) target = $region56
      $region55: #{conformer_conv_module.1} parent=5 // pred_region
        // Predicated region
        $region57: #{conformer_conv_module.1} parent=55 // pred_check
          %p444 = pneg %p63
        $region58: #{conformer_conv_module.1} parent=55 // pred_check_branch
          %446 = sbr.rel (%p444) target = $region60
        $region59: #{conformer_conv_module.1} parent=55 // pred_region
          %s447 = sand.u32 %s53, 1
          %s448 = scalar_lea.sflag [#allocation4], %s447
          %s449 = sand.u32 %s53, 1
          %s450 = smul.addr %s449, 8
          %s451 = scalar_lea.vmem [#allocation3], %s450
          %s453 = ssub.s32 128, 128
          %454 = vsyncadd %s448, %s453
          %s455 = smul.addr %s36, 2
          %s456 = sadd.s32 %s37, %s455
          %s457 = smul.addr %s456, 128
          %s458 = scalar_lea.hbm %s0, %s457
          %s460 = sshll.u32 %s451, 4
          %s461 = int_to_ptr.vmem [resolvable:$true] %s460
          %463 = dma.hbm_to_vmem [thread:$0]  %s458, 128, %s461, %s448
        $region60: #{conformer_conv_module.1} parent=55 // pred_fallthru
          _
        // Predicated region
        $region61: #{conformer_conv_module.1} parent=55 // pred_check
          %p464 = pneg %p97
        $region62: #{conformer_conv_module.1} parent=55 // pred_check_branch
          %466 = sbr.rel (%p464) target = $region64
        $region63: #{conformer_conv_module.1} parent=55 // pred_region
          %s467 = sand.u32 %s29, 1
          %s468 = scalar_lea.sflag [#allocation7], %s467
          %s469 = sand.u32 %s87, 1
          %s470 = smul.addr %s469, 8
          %s471 = scalar_lea.vmem [#allocation6], %s470
          %s472 = ssub.s32 %s37, 1
          %p473 = scmp.gt.s32.totalorder %s472, 0
          %s474 = scalar_select %p473, %s472, 0
          %s476 = ssub.s32 128, 128
          %477 = vsyncadd %s468, %s476
          %s478 = smul.addr %s36, 2
          %s479 = sadd.s32 %s474, %s478
          %s480 = smul.addr %s479, 128
          %s481 = scalar_lea.hbm %s1, %s480
          %s483 = sshll.u32 %s471, 4
          %s484 = int_to_ptr.vmem [resolvable:$true] %s483
          %486 = dma.hbm_to_vmem [thread:$0]  %s481, 128, %s484, %s468
        $region64: #{conformer_conv_module.1} parent=55 // pred_fallthru
          _
        // Predicated region
        $region65: #{conformer_conv_module.1} parent=55 // pred_check
          %p487 = pneg %p131
        $region66: #{conformer_conv_module.1} parent=55 // pred_check_branch
          %489 = sbr.rel (%p487) target = $region68
        $region67: #{conformer_conv_module.1} parent=55 // pred_region
          %s490 = sand.u32 %s29, 1
          %s491 = scalar_lea.sflag [#allocation7], %s490
          %s492 = sand.u32 %s121, 1
          %s493 = smul.addr %s492, 8
          %s494 = scalar_lea.vmem [#allocation8], %s493
          %s495 = sadd.s32 %s37, 1
          %p496 = scmp.lt.s32.totalorder %s495, 1
          %s497 = scalar_select %p496, %s495, 1
          %s499 = ssub.s32 128, 128
          %500 = vsyncadd %s491, %s499
          %s501 = smul.addr %s36, 2
          %s502 = sadd.s32 %s497, %s501
          %s503 = smul.addr %s502, 128
          %s504 = scalar_lea.hbm %s2, %s503
          %s506 = sshll.u32 %s494, 4
          %s507 = int_to_ptr.vmem [resolvable:$true] %s506
          %509 = dma.hbm_to_vmem [thread:$0]  %s504, 128, %s507, %s491
        $region68: #{conformer_conv_module.1} parent=55 // pred_fallthru
          _
      $region56: #{conformer_conv_module.1} parent=5 // pred_fallthru
        _
      %p510 = scmp.le.s32.totalorder 1, %s29
      %p511 = scmp.lt.s32.totalorder %s29, 5
      %p512 = pnand %p510, %p511
      %p513 = pneg %p512
      // Predicated region
      $region69: #{conformer_conv_module.1} parent=5 // pred_check
        _
      $region70: #{conformer_conv_module.1} parent=5 // pred_check_branch
        %515 = sbr.rel (%p512) target = $region72
      $region71: #{conformer_conv_module.1} parent=5 // pred_region
        %s516 = ssub.s32 %s29, 1
        %s517 = sand.u32 %s56, 1
        %s518 = scalar_lea.sflag [#allocation4], %s517
        %s519 = sand.u32 %s56, 1
        %s520 = smul.addr %s519, 8
        %s521 = scalar_lea.vmem [#allocation3], %s520
        // Predicated region
        $region73: #{conformer_conv_module.1} parent=71 // pred_check
          %p522 = pneg %p69
        $region74: #{conformer_conv_module.1} parent=71 // pred_check_branch
          %524 = sbr.rel (%p522) target = $region76
        $region75: #{conformer_conv_module.1} parent=71 // pred_region
          %525 = dma.done %s518, 128
        $region76: #{conformer_conv_module.1} parent=71 // pred_fallthru
          _
        %s526 = sand.u32 %s34, 1
        %s527 = scalar_lea.sflag [#allocation7], %s526
        %s528 = sand.u32 %s90, 1
        %s529 = smul.addr %s528, 8
        %s530 = scalar_lea.vmem [#allocation6], %s529
        // Predicated region
        $region77: #{conformer_conv_module.1} parent=71 // pred_check
          %p531 = pneg %p103
        $region78: #{conformer_conv_module.1} parent=71 // pred_check_branch
          %533 = sbr.rel (%p531) target = $region80
        $region79: #{conformer_conv_module.1} parent=71 // pred_region
          %534 = dma.done %s527, 128
        $region80: #{conformer_conv_module.1} parent=71 // pred_fallthru
          _
        %s535 = sand.u32 %s34, 1
        %s536 = scalar_lea.sflag [#allocation7], %s535
        %s537 = sand.u32 %s124, 1
        %s538 = smul.addr %s537, 8
        %s539 = scalar_lea.vmem [#allocation8], %s538
        // Predicated region
        $region81: #{conformer_conv_module.1} parent=71 // pred_check
          %p540 = pneg %p137
        $region82: #{conformer_conv_module.1} parent=71 // pred_check_branch
          %542 = sbr.rel (%p540) target = $region84
        $region83: #{conformer_conv_module.1} parent=71 // pred_region
          %543 = dma.done %s536, 128
        $region84: #{conformer_conv_module.1} parent=71 // pred_fallthru
          _
        // Predicated region
        $region85: #{conformer_conv_module.1} parent=71 // pred_check
          %p544 = pneg %p242
        $region86: #{conformer_conv_module.1} parent=71 // pred_check_branch
          %546 = sbr.rel (%p544) target = $region88
        $region87: #{conformer_conv_module.1} parent=71 // pred_region
          %547 = dma.done [#allocation10], 512
        $region88: #{conformer_conv_module.1} parent=71 // pred_fallthru
          _
        // Predicated region
        $region89: #{conformer_conv_module.1} parent=71 // pred_check
          %p548 = pneg %p326
        $region90: #{conformer_conv_module.1} parent=71 // pred_check_branch
          %550 = sbr.rel (%p548) target = $region92
        $region91: #{conformer_conv_module.1} parent=71 // pred_region
          %551 = dma.done [#allocation10], 512
        $region92: #{conformer_conv_module.1} parent=71 // pred_fallthru
          _
        %s552 = sand.u32 %s56, 1
        %s553 = scalar_lea.sflag [#allocation4], %s552
        %s554 = sand.u32 %s56, 1
        %s555 = smul.addr %s554, 8
        %s556 = scalar_lea.vmem [#allocation3], %s555
        %p557 = pneg %p69
        %p558 = pneg %p66
        %s559 = sand.u32 %s34, 1
        %s560 = scalar_lea.sflag [#allocation7], %s559
        %s561 = sand.u32 %s90, 1
        %s562 = smul.addr %s561, 8
        %s563 = scalar_lea.vmem [#allocation6], %s562
        %p564 = pneg %p103
        %p565 = pneg %p100
        %s566 = sand.u32 %s34, 1
        %s567 = scalar_lea.sflag [#allocation7], %s566
        %s568 = sand.u32 %s124, 1
        %s569 = smul.addr %s568, 8
        %s570 = scalar_lea.vmem [#allocation8], %s569
        %p571 = pneg %p137
        %p572 = pneg %p134
        %p573 = pneg %p158
        %p574 = pneg %p155
        %p575 = pneg %p179
        %p576 = pneg %p176
        %p577 = pneg %p200
        %p578 = pneg %p197
        %p579 = pneg %p221
        %p580 = pneg %p218
        %p581 = pneg %p242
        %p582 = pneg %p239
        %p583 = pneg %p263
        %p584 = pneg %p260
        %p585 = pneg %p284
        %p586 = pneg %p281
        %p587 = pneg %p305
        %p588 = pneg %p302
        %p589 = pneg %p326
        %p590 = pneg %p323
        %p591 = pneg %p347
        %p592 = pneg %p344
        %p593 = pneg %p375
        %p594 = pneg %p372
        %s595 = sand.u32 %s362, 1
        %s596 = scalar_lea.sflag [#allocation5], %s595
        %s597 = sand.u32 %s362, 1
        %s598 = smul.addr %s597, 8
        %s599 = scalar_lea.vmem [#allocation12], %s598
        %s600 = ssub.s32 %s39, 1
        %p601 = scmp.gt.s32.totalorder %s600, 0
        %s602 = scalar_select %p601, %s600, 0
        %s603 = sadd.s32 %s39, 1
        %p604 = scmp.lt.s32.totalorder %s603, 1
        %s605 = scalar_select %p604, %s603, 1
        %v606 = vld [vmem:[%s530 + $0x5] sm:$0x7]
        %vm607 = vcmask 256000
        %608 = vst.msk [vmem:[#allocation2] sm:$0x7] %vm607, %v606
        %v609 = vld [vmem:[%s521] sm:$0xff]
        %vm610 = vcmask 261120
        %611 = vst.msk [vmem:[#allocation2 + $0x3] sm:$0xff] %vm610, %v609
        %v612 = vld [vmem:[%s539] sm:$0x7]
        %613 = vst.msk [vmem:[#allocation2 + $0xb] sm:$0x7] %vm607, %v612
        %v614 = vld [vmem:[#allocation2] sm:$0xff]
        %v615 = vld [vmem:[#allocation2 + $0x8] sm:$0x3f]
        %v616 = vld [vmem:[%s3] sm:$0x1]
        %v617 = vld [vmem:[%s4] sm:$0x1]
        %v618 = vsel %vm610, %v614, 0.0
        %619 = vadd.xlane.f32.xlu0 %v618
        %v620 = vpop.xlane.xlu0 %619
        %vm621 = vcmask 259072
        %v622 = vsel %vm621, %v615, 0.0
        %623 = vadd.xlane.f32.xlu0 %v622
        %v624 = vpop.xlane.xlu0 %623
        %v625 = vrcp.pop 32.0
        %v626 = vmul.f32 %v620, %v625
        %v627 = vmul.f32 %v624, %v625
        %v628 = vsub.f32 %v614, %v626
        %v629 = vsub.f32 %v615, %v627
        %v630 = vmul.f32 %v628, %v628
        %v631 = vmul.f32 %v629, %v629
        %v632 = vsel %vm610, %v630, 0.0
        %633 = vadd.xlane.f32.xlu0 %v632
        %v634 = vpop.xlane.xlu0 %633
        %v635 = vsel %vm621, %v631, 0.0
        %636 = vadd.xlane.f32.xlu0 %v635
        %v637 = vpop.xlane.xlu0 %636
        %v638 = vmul.f32 %v634, %v625
        %v639 = vmul.f32 %v637, %v625
        %v640 = vadd.f32 %v638, 1e-05
        %v641 = vadd.f32 %v639, 1e-05
        %v642 = vrsqrt.pop %v640
        %v643 = vrsqrt.pop %v641
        %v644 = vmul.f32 %v628, %v642
        %v645 = vmul.f32 %v629, %v643
        %v647 = vlaneseq
        %v648 = vshrl.u32 %v647, 7
        %v649 = vsub.s32 0, %v648
        %v650 = vrot.slane %v616, %v649
        %v652 = vmul.f32 %v644, %v650
        %v653 = vmul.f32 %v645, %v650
        %v655 = vlaneseq
        %v656 = vshrl.u32 %v655, 7
        %v657 = vsub.s32 0, %v656
        %v658 = vrot.slane %v617, %v657
        %v660 = vadd.f32 %v652, %v658
        %v661 = vadd.f32 %v653, %v658
        %v662 = vld [vmem:[%s5] sm:$0xff]
        %v663 = vld [vmem:[%s5 + $0x8] sm:$0xff]
        %v664 = vld [vmem:[%s5 + $0x10] sm:$0xff]
        %v665 = vld [vmem:[%s5 + $0x18] sm:$0xff]
        %v666 = vld [vmem:[%s6] sm:$0x1]
        %v668 = vlaneseq
        %v669 = vshrl.u32 %v668, 7
        %v670 = vsub.s32 0, %v669
        %v671 = vrot.slane %v666, %v670
        %v674 = vsel %vm610, %v660, 0
        %v677 = vsel %vm610, %v661, 0
        %679 = vmatprep.subr.mxu0 0.0
        %680 = vmatpush1.msra.mxu0 0.0
        %681 = vmatprep.subr.mxu0 0.0
        %682 = vmatpush1.msra.mxu0 0.0
        %683 = vmatprep.subr.mxu0 0.0
        %684 = vmatpush1.msra.mxu0 0.0
        %685 = vmatprep.subr.mxu0 0.0
        %686 = vmatpush1.msra.mxu0 0.0
        %687 = vmatprep.subr.mxu0 0.0
        %688 = vmatpush1.msra.mxu0 0.0
        %689 = vmatprep.subr.mxu0 0.0
        %690 = vmatpush1.msra.mxu0 0.0
        %691 = vmatprep.subr.mxu0 0.0
        %692 = vmatpush1.msra.mxu0 0.0
        %693 = vmatprep.subr.mxu0 0.0
        %694 = vmatpush1.msra.mxu0 0.0
        %695 = vmatprep.subr.mxu0 0.0
        %696 = vmatpush1.msra.mxu0 0.0
        %697 = vmatprep.subr.mxu0 0.0
        %698 = vmatpush1.msra.mxu0 0.0
        %699 = vmatprep.subr.mxu0 0.0
        %700 = vmatpush1.msra.mxu0 0.0
        %701 = vmatprep.subr.mxu0 0.0
        %702 = vmatpush1.msra.mxu0 0.0
        %703 = vmatprep.subr.mxu0 0.0
        %704 = vmatpush1.msra.mxu0 %v665
        %705 = vmatprep.subr.mxu0 0.0
        %706 = vmatpush1.msra.mxu0 %v664
        %707 = vmatprep.subr.mxu0 0.0
        %708 = vmatpush1.msra.mxu0 %v663
        %709 = vmatprep.subr.mxu0 0.0
        %710 = vmatpush1.msra.mxu0 %v662
        %711 = vmatprep.subr.mxu0 0.0
        %712 = vmatpush2.msra.mxu0 0.0
        %713 = vmatprep.subr.mxu0 0.0
        %714 = vmatpush2.msra.mxu0 0.0
        %715 = vmatprep.subr.mxu0 0.0
        %716 = vmatpush2.msra.mxu0 0.0
        %717 = vmatprep.subr.mxu0 0.0
        %718 = vmatpush2.msra.mxu0 0.0
        %719 = vmatprep.subr.mxu0 0.0
        %720 = vmatpush2.msra.mxu0 0.0
        %721 = vmatprep.subr.mxu0 0.0
        %722 = vmatpush2.msra.mxu0 0.0
        %723 = vmatprep.subr.mxu0 0.0
        %724 = vmatpush2.msra.mxu0 0.0
        %725 = vmatprep.subr.mxu0 0.0
        %726 = vmatpush2.msra.mxu0 0.0
        %727 = vmatprep.subr.mxu0 0.0
        %728 = vmatpush2.msra.mxu0 0.0
        %729 = vmatprep.subr.mxu0 0.0
        %730 = vmatpush2.msra.mxu0 0.0
        %731 = vmatprep.subr.mxu0 0.0
        %732 = vmatpush2.msra.mxu0 0.0
        %733 = vmatprep.subr.mxu0 0.0
        %734 = vmatpush2.msra.mxu0 0.0
        %735 = vmatprep.subr.mxu0 0.0
        %736 = vmatpush2.msra.mxu0 0.0
        %737 = vmatprep.subr.mxu0 0.0
        %738 = vmatpush2.msra.mxu0 0.0
        %739 = vmatprep.subr.mxu0 0.0
        %740 = vmatpush2.msra.mxu0 0.0
        %741 = vmatprep.subr.mxu0 0.0
        %742 = vmatpush2.msra.mxu0 0.0
        %743 = vmatprep.mubr.f32.mxu0 0.0
        %744 = vmatmul.mubr.f32.gmra.mxu0 %v674
        %v745 = vpop.f32.mrf.mxu0
        %v746 = vadd.f32 %v671, %v745
        %v747 = vpop.f32.mrf.mxu0
        %748 = vmatprep.mubr.f32.mxu0 0.0
        %749 = vmatmul.mubr.f32.gmra.mxu0 %v677
        %v750 = vpop.f32.mrf.mxu0
        %v751 = vadd.f32 %v671, %v750
        %v752 = vpop.f32.mrf.mxu0
        %753 = vdwg.mxu0
        %v754 = vld [vmem:[#allocation9] sm:$0xff]
        %v755 = vld [vmem:[#allocation9 + $0x8] sm:$0xff]
        %v756 = vld [vmem:[#allocation9 + $0x10] sm:$0xff]
        %v757 = vld [vmem:[#allocation9 + $0x18] sm:$0xff]
        %v758 = vld [vmem:[%s8] sm:$0x1]
        %v760 = vlaneseq
        %v761 = vshrl.u32 %v760, 7
        %v762 = vsub.s32 0, %v761
        %v763 = vrot.slane %v758, %v762
        %765 = vmatprep.subr.mxu0 0.0
        %766 = vmatpush1.msra.mxu0 0.0
        %767 = vmatprep.subr.mxu0 0.0
        %768 = vmatpush1.msra.mxu0 0.0
        %769 = vmatprep.subr.mxu0 0.0
        %770 = vmatpush1.msra.mxu0 0.0
        %771 = vmatprep.subr.mxu0 0.0
        %772 = vmatpush1.msra.mxu0 0.0
        %773 = vmatprep.subr.mxu0 0.0
        %774 = vmatpush1.msra.mxu0 0.0
        %775 = vmatprep.subr.mxu0 0.0
        %776 = vmatpush1.msra.mxu0 0.0
        %777 = vmatprep.subr.mxu0 0.0
        %778 = vmatpush1.msra.mxu0 0.0
        %779 = vmatprep.subr.mxu0 0.0
        %780 = vmatpush1.msra.mxu0 0.0
        %781 = vmatprep.subr.mxu0 0.0
        %782 = vmatpush1.msra.mxu0 0.0
        %783 = vmatprep.subr.mxu0 0.0
        %784 = vmatpush1.msra.mxu0 0.0
        %785 = vmatprep.subr.mxu0 0.0
        %786 = vmatpush1.msra.mxu0 0.0
        %787 = vmatprep.subr.mxu0 0.0
        %788 = vmatpush1.msra.mxu0 0.0
        %789 = vmatprep.subr.mxu0 0.0
        %790 = vmatpush1.msra.mxu0 %v757
        %791 = vmatprep.subr.mxu0 0.0
        %792 = vmatpush1.msra.mxu0 %v756
        %793 = vmatprep.subr.mxu0 0.0
        %794 = vmatpush1.msra.mxu0 %v755
        %795 = vmatprep.subr.mxu0 0.0
        %796 = vmatpush1.msra.mxu0 %v754
        %797 = vmatprep.subr.mxu0 0.0
        %798 = vmatpush2.msra.mxu0 0.0
        %799 = vmatprep.subr.mxu0 0.0
        %800 = vmatpush2.msra.mxu0 0.0
        %801 = vmatprep.subr.mxu0 0.0
        %802 = vmatpush2.msra.mxu0 0.0
        %803 = vmatprep.subr.mxu0 0.0
        %804 = vmatpush2.msra.mxu0 0.0
        %805 = vmatprep.subr.mxu0 0.0
        %806 = vmatpush2.msra.mxu0 0.0
        %807 = vmatprep.subr.mxu0 0.0
        %808 = vmatpush2.msra.mxu0 0.0
        %809 = vmatprep.subr.mxu0 0.0
        %810 = vmatpush2.msra.mxu0 0.0
        %811 = vmatprep.subr.mxu0 0.0
        %812 = vmatpush2.msra.mxu0 0.0
        %813 = vmatprep.subr.mxu0 0.0
        %814 = vmatpush2.msra.mxu0 0.0
        %815 = vmatprep.subr.mxu0 0.0
        %816 = vmatpush2.msra.mxu0 0.0
        %817 = vmatprep.subr.mxu0 0.0
        %818 = vmatpush2.msra.mxu0 0.0
        %819 = vmatprep.subr.mxu0 0.0
        %820 = vmatpush2.msra.mxu0 0.0
        %821 = vmatprep.subr.mxu0 0.0
        %822 = vmatpush2.msra.mxu0 0.0
        %823 = vmatprep.subr.mxu0 0.0
        %824 = vmatpush2.msra.mxu0 0.0
        %825 = vmatprep.subr.mxu0 0.0
        %826 = vmatpush2.msra.mxu0 0.0
        %827 = vmatprep.subr.mxu0 0.0
        %828 = vmatpush2.msra.mxu0 0.0
        %829 = vmatprep.mubr.f32.mxu0 0.0
        %830 = vmatmul.mubr.f32.gmra.mxu0 %v674
        %v831 = vpop.f32.mrf.mxu0
        %v832 = vadd.f32 %v763, %v831
        %v833 = vpop.f32.mrf.mxu0
        %834 = vmatprep.mubr.f32.mxu0 0.0
        %835 = vmatmul.mubr.f32.gmra.mxu0 %v677
        %v836 = vpop.f32.mrf.mxu0
        %v837 = vadd.f32 %v763, %v836
        %v838 = vpop.f32.mrf.mxu0
        %839 = vdwg.mxu0
        %v840 = vxor.u32 %v832, 2147483648
        %v841 = vxor.u32 %v837, 2147483648
        %v842 = vmul.f32 %v840, 1.442695
        %v843 = vpow.pop %v842
        %v844 = vmul.f32 %v841, 1.442695
        %v845 = vpow.pop %v844
        %v846 = vadd.f32 %v843, 1.0
        %v847 = vadd.f32 %v845, 1.0
        %v848 = vrcp.pop %v846
        %v849 = vmul.f32 1.0, %v848
        %v850 = vrcp.pop %v847
        %v851 = vmul.f32 1.0, %v850
        %v852 = vmul.f32 %v746, %v849
        %v853 = vmul.f32 %v751, %v851
        %v854 = vlaneseq
        %v855 = vshrl.u32 %v854, 7
        %v856 = vadd.s32 %v855, 8
        %vm857 = vcmp.ge.s32.totalorder %v855, 3
        %vm858 = vcmp.ge.s32.totalorder %v856, 3
        %p859 = scmp.gt.s32.totalorder %s39, 0
        %s860 = scalar_select %p859, 1, 0
        %v861 = vstv %s860
        %vm862 = vcmp.eq.s32.totalorder %v861, 1
        %vm863 = vmor %vm857, %vm862
        %vm864 = vmor %vm858, %vm862
        %vm865 = vcmp.lt.s32.totalorder %v855, 11
        %vm866 = vcmp.lt.s32.totalorder %v856, 11
        %p867 = scmp.lt.s32.totalorder %s39, 1
        %s868 = scalar_select %p867, 1, 0
        %v869 = vstv %s868
        %vm870 = vcmp.eq.s32.totalorder %v869, 1
        %vm871 = vmor %vm865, %vm870
        %vm872 = vmor %vm866, %vm870
        %vm873 = vmand %vm863, %vm871
        %vm874 = vmand %vm864, %vm872
        %v875 = vsel %vm873, %v852, 0.0
        %v876 = vsel %vm874, %v853, 0.0
        %v877 = vld [vmem:[%s9] sm:$0x1]
        %v879 = vlaneseq
        %v880 = vshrl.u32 %v879, 7
        %v881 = vsub.s32 0, %v880
        %v882 = vrot.slane %v877, %v881
        %v884 = vmul.f32 %v875, %v882
        %v885 = vadd.f32 %v884, 0.0
        %s886 = scalar_lea.vmem %s9, 1
        %v887 = vld [vmem:[%s886] sm:$0x1]
        %v889 = vlaneseq
        %v890 = vshrl.u32 %v889, 7
        %v891 = vsub.s32 0, %v890
        %v892 = vrot.slane %v887, %v891
        %v894 = vmul.f32 %v875, %v892
        %v895 = vmul.f32 %v876, %v892
        %vm898 = vcmask 1046528
        %v899 = vrot.slane %v894, 1
        %v900 = vrot.slane %v895, 1
        %v901 = vsel %vm898, %v899, %v900
        %v903 = vadd.f32 %v885, %v901
        %s904 = scalar_lea.vmem %s9, 2
        %v905 = vld [vmem:[%s904] sm:$0x1]
        %v907 = vlaneseq
        %v908 = vshrl.u32 %v907, 7
        %v909 = vsub.s32 0, %v908
        %v910 = vrot.slane %v905, %v909
        %v912 = vmul.f32 %v875, %v910
        %v913 = vmul.f32 %v876, %v910
        %vm916 = vcmask 1045504
        %v917 = vrot.slane %v912, 2
        %v918 = vrot.slane %v913, 2
        %v919 = vsel %vm916, %v917, %v918
        %v921 = vadd.f32 %v903, %v919
        %s922 = scalar_lea.vmem %s9, 3
        %v923 = vld [vmem:[%s922] sm:$0x1]
        %v925 = vlaneseq
        %v926 = vshrl.u32 %v925, 7
        %v927 = vsub.s32 0, %v926
        %v928 = vrot.slane %v923, %v927
        %v930 = vmul.f32 %v875, %v928
        %v931 = vmul.f32 %v876, %v928
        %vm934 = vcmask 1044480
        %v935 = vrot.slane %v930, 3
        %v936 = vrot.slane %v931, 3
        %v937 = vsel %vm934, %v935, %v936
        %v939 = vadd.f32 %v921, %v937
        %s940 = scalar_lea.vmem %s9, 4
        %v941 = vld [vmem:[%s940] sm:$0x1]
        %v943 = vlaneseq
        %v944 = vshrl.u32 %v943, 7
        %v945 = vsub.s32 0, %v944
        %v946 = vrot.slane %v941, %v945
        %v948 = vmul.f32 %v875, %v946
        %v949 = vmul.f32 %v876, %v946
        %vm952 = vcmask 1043456
        %v953 = vrot.slane %v948, 4
        %v954 = vrot.slane %v949, 4
        %v955 = vsel %vm952, %v953, %v954
        %v957 = vadd.f32 %v939, %v955
        %s958 = scalar_lea.vmem %s9, 5
        %v959 = vld [vmem:[%s958] sm:$0x1]
        %v961 = vlaneseq
        %v962 = vshrl.u32 %v961, 7
        %v963 = vsub.s32 0, %v962
        %v964 = vrot.slane %v959, %v963
        %v966 = vmul.f32 %v875, %v964
        %v967 = vmul.f32 %v876, %v964
        %vm970 = vcmask 1042432
        %v971 = vrot.slane %v966, 5
        %v972 = vrot.slane %v967, 5
        %v973 = vsel %vm970, %v971, %v972
        %v975 = vadd.f32 %v957, %v973
        %s976 = scalar_lea.vmem %s9, 6
        %v977 = vld [vmem:[%s976] sm:$0x1]
        %v979 = vlaneseq
        %v980 = vshrl.u32 %v979, 7
        %v981 = vsub.s32 0, %v980
        %v982 = vrot.slane %v977, %v981
        %v984 = vmul.f32 %v875, %v982
        %v985 = vmul.f32 %v876, %v982
        %vm988 = vcmask 1041408
        %v989 = vrot.slane %v984, 6
        %v990 = vrot.slane %v985, 6
        %v991 = vsel %vm988, %v989, %v990
        %v993 = vadd.f32 %v975, %v991
        %v994 = vld [vmem:[%s10] sm:$0x1]
        %v996 = vlaneseq
        %v997 = vshrl.u32 %v996, 7
        %v998 = vsub.s32 0, %v997
        %v999 = vrot.slane %v994, %v998
        %v1001 = vadd.f32 %v993, %v999
        %v1002 = vxor.u32 %v1001, 2147483648
        %v1003 = vmul.f32 %v1002, 1.442695
        %v1004 = vpow.pop %v1003
        %v1005 = vadd.f32 %v1004, 1.0
        %v1006 = vrcp.pop %v1005
        %v1007 = vmul.f32 1.0, %v1006
        %v1008 = vmul.f32 %v1001, %v1007
        %v1009 = vld [vmem:[#allocation11] sm:$0xff]
        %v1010 = vld [vmem:[#allocation11 + $0x8] sm:$0xff]
        %v1011 = vld [vmem:[#allocation11 + $0x10] sm:$0xff]
        %v1012 = vld [vmem:[#allocation11 + $0x18] sm:$0xff]
        %v1013 = vld [vmem:[%s12] sm:$0x1]
        %v1015 = vlaneseq
        %v1016 = vshrl.u32 %v1015, 7
        %v1017 = vsub.s32 0, %v1016
        %v1018 = vrot.slane %v1013, %v1017
        %v1021 = vsel %vm610, %v1008, 0
        %1023 = vmatprep.subr.mxu0 0.0
        %1024 = vmatpush1.msra.mxu0 0.0
        %1025 = vmatprep.subr.mxu0 0.0
        %1026 = vmatpush1.msra.mxu0 0.0
        %1027 = vmatprep.subr.mxu0 0.0
        %1028 = vmatpush1.msra.mxu0 0.0
        %1029 = vmatprep.subr.mxu0 0.0
        %1030 = vmatpush1.msra.mxu0 0.0
        %1031 = vmatprep.subr.mxu0 0.0
        %1032 = vmatpush1.msra.mxu0 0.0
        %1033 = vmatprep.subr.mxu0 0.0
        %1034 = vmatpush1.msra.mxu0 0.0
        %1035 = vmatprep.subr.mxu0 0.0
        %1036 = vmatpush1.msra.mxu0 0.0
        %1037 = vmatprep.subr.mxu0 0.0
        %1038 = vmatpush1.msra.mxu0 0.0
        %1039 = vmatprep.subr.mxu0 0.0
        %1040 = vmatpush1.msra.mxu0 0.0
        %1041 = vmatprep.subr.mxu0 0.0
        %1042 = vmatpush1.msra.mxu0 0.0
        %1043 = vmatprep.subr.mxu0 0.0
        %1044 = vmatpush1.msra.mxu0 0.0
        %1045 = vmatprep.subr.mxu0 0.0
        %1046 = vmatpush1.msra.mxu0 0.0
        %1047 = vmatprep.subr.mxu0 0.0
        %1048 = vmatpush1.msra.mxu0 %v1012
        %1049 = vmatprep.subr.mxu0 0.0
        %1050 = vmatpush1.msra.mxu0 %v1011
        %1051 = vmatprep.subr.mxu0 0.0
        %1052 = vmatpush1.msra.mxu0 %v1010
        %1053 = vmatprep.subr.mxu0 0.0
        %1054 = vmatpush1.msra.mxu0 %v1009
        %1055 = vmatprep.subr.mxu0 0.0
        %1056 = vmatpush2.msra.mxu0 0.0
        %1057 = vmatprep.subr.mxu0 0.0
        %1058 = vmatpush2.msra.mxu0 0.0
        %1059 = vmatprep.subr.mxu0 0.0
        %1060 = vmatpush2.msra.mxu0 0.0
        %1061 = vmatprep.subr.mxu0 0.0
        %1062 = vmatpush2.msra.mxu0 0.0
        %1063 = vmatprep.subr.mxu0 0.0
        %1064 = vmatpush2.msra.mxu0 0.0
        %1065 = vmatprep.subr.mxu0 0.0
        %1066 = vmatpush2.msra.mxu0 0.0
        %1067 = vmatprep.subr.mxu0 0.0
        %1068 = vmatpush2.msra.mxu0 0.0
        %1069 = vmatprep.subr.mxu0 0.0
        %1070 = vmatpush2.msra.mxu0 0.0
        %1071 = vmatprep.subr.mxu0 0.0
        %1072 = vmatpush2.msra.mxu0 0.0
        %1073 = vmatprep.subr.mxu0 0.0
        %1074 = vmatpush2.msra.mxu0 0.0
        %1075 = vmatprep.subr.mxu0 0.0
        %1076 = vmatpush2.msra.mxu0 0.0
        %1077 = vmatprep.subr.mxu0 0.0
        %1078 = vmatpush2.msra.mxu0 0.0
        %1079 = vmatprep.subr.mxu0 0.0
        %1080 = vmatpush2.msra.mxu0 0.0
        %1081 = vmatprep.subr.mxu0 0.0
        %1082 = vmatpush2.msra.mxu0 0.0
        %1083 = vmatprep.subr.mxu0 0.0
        %1084 = vmatpush2.msra.mxu0 0.0
        %1085 = vmatprep.subr.mxu0 0.0
        %1086 = vmatpush2.msra.mxu0 0.0
        %1087 = vmatprep.mubr.f32.mxu0 0.0
        %1088 = vmatmul.mubr.f32.gmra.mxu0 %v1021
        %v1089 = vpop.f32.mrf.mxu0
        %v1090 = vadd.f32 %v1018, %v1089
        %v1091 = vpop.f32.mrf.mxu0
        %1092 = vdwg.mxu0
        %1093 = vst.msk [vmem:[%s599] sm:$0xff] %vm610, %v1090
        %s1094 = sand.u32 %s362, 1
        %s1095 = scalar_lea.sflag [#allocation5], %s1094
        %s1096 = sand.u32 %s362, 1
        %s1097 = smul.addr %s1096, 8
        %s1098 = scalar_lea.vmem [#allocation12], %s1097
        // Predicated region
        $region93: #{conformer_conv_module.1} parent=71 // pred_check
          %p1099 = pneg %p372
        $region94: #{conformer_conv_module.1} parent=71 // pred_check_branch
          %1101 = sbr.rel (%p1099) target = $region96
        $region95: #{conformer_conv_module.1} parent=71 // pred_region
          %s1103 = ssub.s32 128, 128
          %1104 = vsyncadd %s1095, %s1103
          %s1105 = smul.addr %s38, 2
          %s1106 = sadd.s32 %s39, %s1105
          %s1107 = smul.addr %s1106, 128
          %s1108 = scalar_lea.hbm %s13, %s1107
          %s1110 = sshll.u32 %s1098, 4
          %s1111 = int_to_ptr.vmem [resolvable:$true] %s1110
          %1113 = dma.vmem_to_hbm [thread:$0]  %s1111, 128, %s1108, %s1095
        $region96: #{conformer_conv_module.1} parent=71 // pred_fallthru
          _
      $region72: #{conformer_conv_module.1} parent=5 // pred_fallthru
        _
      %p1114 = scmp.le.s32.totalorder 2, %s29
      // Predicated region
      $region97: #{conformer_conv_module.1} parent=5 // pred_check
        %p1115 = pneg %p1114
      $region98: #{conformer_conv_module.1} parent=5 // pred_check_branch
        %1117 = sbr.rel (%p1115) target = $region100
      $region99: #{conformer_conv_module.1} parent=5 // pred_region
        %s1118 = ssub.s32 %s29, 2
        // Predicated region
        $region101: #{conformer_conv_module.1} parent=99 // pred_check
          %p1119 = pneg %p378
        $region102: #{conformer_conv_module.1} parent=99 // pred_check_branch
          %1121 = sbr.rel (%p1119) target = $region104
        $region103: #{conformer_conv_module.1} parent=99 // pred_region
          %s1122 = sand.u32 %s363, 1
          %s1123 = scalar_lea.sflag [#allocation5], %s1122
          %s1124 = sand.u32 %s363, 1
          %s1125 = smul.addr %s1124, 8
          %s1126 = scalar_lea.vmem [#allocation12], %s1125
          %1127 = dma.done %s1123, 128
        $region104: #{conformer_conv_module.1} parent=99 // pred_fallthru
          _
      $region100: #{conformer_conv_module.1} parent=5 // pred_fallthru
        _
    $region6: #{conformer_conv_module.1} parent=1 // loop_footer
      %s33 = sadd.s32 1, %s29
    $region7: #{conformer_conv_module.1} parent=1 // loop_footer_branch
      %28 = sbr.rel target = $region3
    $region8: #{conformer_conv_module.1} parent=1 // loop_exit
      _
    %1128 = vsyncpa [#allocation4], 1
    %s1129 = scalar_lea.sflag [#allocation4], 1
    %1130 = vsyncpa %s1129, 1
    %1131 = vsyncpa [#allocation7], 1
    %s1132 = scalar_lea.sflag [#allocation7], 1
    %1133 = vsyncpa %s1132, 1
    %1134 = vsyncpa [#allocation10], 1
    %1135 = vsyncpa [#allocation5], 1
    %s1136 = scalar_lea.sflag [#allocation5], 1
    %1137 = vsyncpa %s1136, 1

</llo_original>
